<compile_context>
chip_gen: v7x
topology: tpu7x:2x2x1
jax: 0.10.0
libtpu: 0.0.40
codegen_flags: <defaults>
</compile_context>

<pallas_src>
import math
import functools

import jax
import jax.numpy as jnp
from jax import lax
from jax.experimental import pallas as pl
from jax.experimental.pallas import tpu as pltpu

# ----------------------------- configuration ---------------------------------
B = 2            # batch
SEQ_LEN = 16     # sequence length
D_MODEL = 32     # model width
N_HEAD = 4       # attention heads
D_K = 8          # per-head dim
FACTOR = 2       # ProbSparse factor
EPS = 1e-6
D_INNER = N_HEAD * D_K


def _prob_sparse_sizes(seq_len):
    u = int(FACTOR * math.ceil(math.log(seq_len)))
    u = min(u, seq_len)
    return u, u  # sample_k, n_top


def _tensorcores_per_chip():
    """1 => fold batch into one grid step (v5e/v6e single TC);
    >1 => one grid step per batch, marked "parallel" (v7x / megacore)."""
    try:
        kind = jax.devices()[0].device_kind.lower()
    except Exception:
        return 1
    single_tc = ("v5e", "v5 lite", "v5lite", "v6", "trillium")
    return 1 if any(t in kind for t in single_tc) else 2


# ------------------------------ fused kernel ----------------------------------
def _fused_kernel(cnt_ref, x_ref, wqkv_ref, wfc_ref, bfc_ref, g_ref, beta_ref,
                  o_ref, *, seq_len, n_head, d_k, n_top, n_batch):
    S = seq_len
    d_inner = n_head * d_k

    # ---- constants shared across batches & heads (computed once) -------------
    cnt = cnt_ref[...]                           # (S,S) sampled-column multiplicities
    hit = cnt > 0.0                              # (S,S) sampled-column mask
    col_idx = lax.broadcasted_iota(jnp.int32, (S, S), 1)
    row_idx = lax.broadcasted_iota(jnp.int32, (S, S), 0)
    lower_tri = col_idx < row_idx                # strict lower triangle (tie-break j < i)

    x = x_ref[...]                               # (n_batch, S, D) f32
    d_model = x.shape[-1]
    x2 = x.reshape(n_batch * S, d_model)         # fold batch into sublanes (also residual)

    # ---- fused Q/K/V projection for all batches (q-scale folded into weights)
    qkv = jnp.dot(x2.astype(jnp.bfloat16), wqkv_ref[...],
                  preferred_element_type=jnp.float32)        # (n_batch*S, 3*d_inner)

    ctx_batches = []
    for b in range(n_batch):
        qkv_b = qkv[b * S:(b + 1) * S, :]
        q_all = qkv_b[:, :d_inner]
        k_all = qkv_b[:, d_inner:2 * d_inner]
        v_all = qkv_b[:, 2 * d_inner:3 * d_inner]

        # one K transpose per batch (replaces 4 implicit per-head transposes)
        k_t = jnp.transpose(k_all).astype(jnp.bfloat16)      # (d_inner, S)
        # one mean(V) per batch (hoisted out of the head loop)
        v_mean = jnp.mean(v_all, axis=0, keepdims=True)      # (1, d_inner)

        ctx_heads = []
        for h in range(n_head):
            cs = slice(h * d_k, (h + 1) * d_k)
            q_h = q_all[:, cs].astype(jnp.bfloat16)           # (S, E)
            v_h = v_all[:, cs].astype(jnp.bfloat16)           # (S, E)

            # full scores (S,S): q already carries the 1/sqrt(d_k) scale
            scores = jnp.dot(q_h, k_t[cs, :],
                             preferred_element_type=jnp.float32)

            # sparsity measure M over the randomly sampled columns
            qk_sum = jnp.sum(scores * cnt, axis=-1, keepdims=True)
            qk_max = jnp.max(jnp.where(hit, scores, -jnp.inf),
                             axis=-1, keepdims=True)
            m = qk_max - qk_sum * (1.0 / S)                   # (S,1)  M = max - mean

            # parallel rank-based top-k (lowest index wins on float ties)
            m_mat = jnp.broadcast_to(m, (S, S))               # m_mat[i,j]   = m_i
            m_mat_t = jnp.transpose(m_mat)                    # m_mat_t[i,j] = m_j
            beats = jnp.logical_or(m_mat_t > m_mat,
                                   jnp.logical_and(m_mat_t == m_mat, lower_tri))
            rank = jnp.sum(jnp.where(beats, 1.0, 0.0), axis=-1, keepdims=True)
            sel = rank < float(n_top)                         # (S,1) active query rows

            # softmax attention for all rows (only selected rows kept below)
            smax = jnp.max(scores, axis=-1, keepdims=True)
            p = jnp.exp(scores - smax)
            denom = jnp.sum(p, axis=-1, keepdims=True)
            attn = p * pl.reciprocal(denom, approx=True)
            attn_out = jnp.dot(attn.astype(jnp.bfloat16), v_h,
                               preferred_element_type=jnp.float32)   # (S, E)

            # initial context = mean(V); "scatter" at selected rows = masked select
            ctx_heads.append(jnp.where(sel, attn_out, v_mean[:, cs]))

        ctx_batches.append(jnp.concatenate(ctx_heads, axis=-1))      # (S, d_inner)

    context = (ctx_batches[0] if n_batch == 1
               else jnp.concatenate(ctx_batches, axis=0))            # (n_batch*S, d_inner)

    # ---- fc + bias + residual + post-LayerNorm (dropout = identity in eval) --
    y = jnp.dot(context.astype(jnp.bfloat16), wfc_ref[...],
                preferred_element_type=jnp.float32) + bfc_ref[...]
    y = y + x2
    mean = jnp.mean(y, axis=-1, keepdims=True)
    var = jnp.mean((y - mean) ** 2, axis=-1, keepdims=True)
    out = (y - mean) * lax.rsqrt(var + EPS) * g_ref[...] + beta_ref[...]
    o_ref[...] = out.reshape(n_batch, S, d_model)


# ------------------------------ forward wrapper --------------------------------
def prob_sparse_attention(x, params, sample_key):
    bsz, seq_len, d_model = x.shape
    sample_k, n_top = _prob_sparse_sizes(seq_len)

    # torch.randint(L_K, (L_Q, sample_k)) equivalent; shared by every batch & head.
    index_sample = jax.random.randint(
        sample_key, (seq_len, sample_k), 0, seq_len, dtype=jnp.int32)
    # Precompute the sampled-column multiplicity mask ONCE (perf item 2):
    # cnt[i, j] = number of times column j was sampled for query row i.
    cnt = jnp.sum(jax.nn.one_hot(index_sample, seq_len, dtype=jnp.float32), axis=1)

    # Batch folding policy (perf items 3/4): single-TC chips -> one grid step;
    # multi-TC chips -> one batch per grid step, split across cores.
    n_batch = bsz if _tensorcores_per_chip() == 1 else 1
    grid = (bsz // n_batch,)

    kernel = functools.partial(
        _fused_kernel, seq_len=seq_len, n_head=N_HEAD, d_k=D_K,
        n_top=n_top, n_batch=n_batch)

    return pl.pallas_call(
        kernel,
        grid=grid,
        in_specs=[
            pl.BlockSpec((seq_len, seq_len), lambda b: (0, 0)),              # count mask (resident)
            pl.BlockSpec((n_batch, seq_len, d_model), lambda b: (b, 0, 0)),  # x
            pl.BlockSpec((d_model, 3 * D_INNER), lambda b: (0, 0)),          # wqkv (bf16)
            pl.BlockSpec((D_INNER, d_model), lambda b: (0, 0)),              # wfc (bf16)
            pl.BlockSpec((1, d_model), lambda b: (0, 0)),                    # fc bias
            pl.BlockSpec((1, d_model), lambda b: (0, 0)),                    # LN gamma
            pl.BlockSpec((1, d_model), lambda b: (0, 0)),                    # LN beta
        ],
        out_specs=pl.BlockSpec((n_batch, seq_len, d_model), lambda b: (b, 0, 0)),
        out_shape=jax.ShapeDtypeStruct((bsz, seq_len, d_model), jnp.float32),
        compiler_params=pltpu.CompilerParams(
            dimension_semantics=("parallel",)),
    )(cnt, x.astype(jnp.float32), params["wqkv"], params["wfc"],
      params["bfc"], params["gamma"], params["beta"])


# --------------------------- parameter initialization ---------------------------
def xavier_uniform(key, fan_in, fan_out):
    bound = math.sqrt(6.0 / (fan_in + fan_out))
    return jax.random.uniform(key, (fan_in, fan_out), jnp.float32, -bound, bound)


def init_params(key):
    k_wq, k_wk, k_wv, k_wfc, k_bfc = jax.random.split(key, 5)
    bias_bound = 1.0 / math.sqrt(D_INNER)
    # fold the 1/sqrt(d_k) query scale into the Q weight columns (one-time transform)
    wq = xavier_uniform(k_wq, D_MODEL, D_INNER) * (1.0 / math.sqrt(D_K))
    wk = xavier_uniform(k_wk, D_MODEL, D_INNER)
    wv = xavier_uniform(k_wv, D_MODEL, D_INNER)
    return {
        "wqkv": jnp.concatenate([wq, wk, wv], axis=1).astype(jnp.bfloat16),  # (D_MODEL, 3*H*d_k)
        "wfc": xavier_uniform(k_wfc, D_INNER, D_MODEL).astype(jnp.bfloat16),  # (H*d_k, D_MODEL)
        "bfc": jax.random.uniform(k_bfc, (1, D_MODEL), jnp.float32,
                                  -bias_bound, bias_bound),
        "gamma": jnp.ones((1, D_MODEL), jnp.float32),
        "beta": jnp.zeros((1, D_MODEL), jnp.float32),
    }


# ------------------------------------ main --------------------------------------
if __name__ == "__main__":
    root = jax.random.PRNGKey(0)
    k_x, k_params, k_sample = jax.random.split(root, 3)

    x = jax.random.normal(k_x, (B, SEQ_LEN, D_MODEL), jnp.float32)
    params = init_params(k_params)

    forward = jax.jit(prob_sparse_attention)
    out = jax.block_until_ready(forward(x, params, k_sample))

    assert out.shape == (B, SEQ_LEN, D_MODEL), out.shape
    assert bool(jnp.all(jnp.isfinite(out)))
    print("KERNEL_OK")
</pallas_src>

<mosaic_0001>
module attributes {stable_mosaic.version = 11 : i64} {
  func.func @_fused_kernel(%arg0: i32, %arg1: memref<16x16xf32, #tpu.memory_space<vmem>>, %arg2: memref<1x16x32xf32, #tpu.memory_space<vmem>>, %arg3: memref<32x96xbf16, #tpu.memory_space<vmem>>, %arg4: memref<32x32xbf16, #tpu.memory_space<vmem>>, %arg5: memref<1x32xf32, #tpu.memory_space<vmem>>, %arg6: memref<1x32xf32, #tpu.memory_space<vmem>>, %arg7: memref<1x32xf32, #tpu.memory_space<vmem>>, %arg8: memref<1x16x32xf32, #tpu.memory_space<vmem>>) attributes {dimension_semantics = [#tpu.dimension_semantics<parallel>], iteration_bounds = array<i64: 2>, scalar_prefetch = 0 : i64, scratch_operands = 0 : i64, tpu.core_type = #tpu.core_type<tc>, window_params = [{pipeline_mode = #tpu.pipeline_mode<synchronous>, transform_indices = @transform_0, window_bounds = array<i64: 16, 16>}, {transform_indices = @transform_1, window_bounds = array<i64: 1, 16, 32>}, {pipeline_mode = #tpu.pipeline_mode<synchronous>, transform_indices = @transform_2, window_bounds = array<i64: 32, 96>}, {pipeline_mode = #tpu.pipeline_mode<synchronous>, transform_indices = @transform_3, window_bounds = array<i64: 32, 32>}, {pipeline_mode = #tpu.pipeline_mode<synchronous>, transform_indices = @transform_4, window_bounds = array<i64: 1, 32>}, {pipeline_mode = #tpu.pipeline_mode<synchronous>, transform_indices = @transform_5, window_bounds = array<i64: 1, 32>}, {pipeline_mode = #tpu.pipeline_mode<synchronous>, transform_indices = @transform_6, window_bounds = array<i64: 1, 32>}, {transform_indices = @transform_7, window_bounds = array<i64: 1, 16, 32>}]} {
    %c0 = arith.constant 0 : index
    %c0_0 = arith.constant 0 : index
    %0 = vector.load %arg1[%c0, %c0_0] : memref<16x16xf32, #tpu.memory_space<vmem>>, vector<16x16xf32>
    %cst = arith.constant 0.000000e+00 : f32
    %1 = vector.broadcast %cst : f32 to vector<16x16xf32>
    %2 = arith.cmpf ogt, %0, %1 : vector<16x16xf32>
    %3 = tpu.iota {dimensions = array<i32: 1>} : vector<16x16xi32>
    %4 = tpu.iota {dimensions = array<i32: 0>} : vector<16x16xi32>
    %5 = arith.cmpi slt, %3, %4 : vector<16x16xi32>
    %c0_1 = arith.constant 0 : index
    %c0_2 = arith.constant 0 : index
    %c0_3 = arith.constant 0 : index
    %6 = vector.load %arg2[%c0_1, %c0_2, %c0_3] : memref<1x16x32xf32, #tpu.memory_space<vmem>>, vector<1x16x32xf32>
    %7 = vector.shape_cast %6 : vector<1x16x32xf32> to vector<16x32xf32>
    %8 = arith.truncf %7 : vector<16x32xf32> to vector<16x32xbf16>
    %c0_4 = arith.constant 0 : index
    %c0_5 = arith.constant 0 : index
    %9 = vector.load %arg3[%c0_4, %c0_5] : memref<32x96xbf16, #tpu.memory_space<vmem>>, vector<32x96xbf16>
    %cst_6 = arith.constant dense<0.000000e+00> : vector<16x96xf32>
    %10 = tpu.matmul %8, %9, %cst_6 {dimension_numbers = #tpu.dot_dimension_numbers<[1], [0], [0], [1], [0, 0, 1, 1], [], []>} : vector<16x32xbf16>, vector<32x96xbf16>, vector<16x96xf32> -> vector<16x96xf32>
    %11 = vector.extract_strided_slice %10 {offsets = [0, 0], sizes = [16, 32], strides = [1, 1]} : vector<16x96xf32> to vector<16x32xf32>
    %12 = vector.extract_strided_slice %10 {offsets = [0, 32], sizes = [16, 32], strides = [1, 1]} : vector<16x96xf32> to vector<16x32xf32>
    %13 = vector.extract_strided_slice %10 {offsets = [0, 64], sizes = [16, 32], strides = [1, 1]} : vector<16x96xf32> to vector<16x32xf32>
    %14 = tpu.transpose %12, [1, 0] : vector<16x32xf32> -> vector<32x16xf32>
    %15 = arith.truncf %14 : vector<32x16xf32> to vector<32x16xbf16>
    %cst_7 = arith.constant dense<0.000000e+00> : vector<32xf32>
    %16 = vector.multi_reduction <add>, %13, %cst_7 [0] : vector<16x32xf32> to vector<32xf32>
    %17 = vector.shape_cast %16 : vector<32xf32> to vector<1x32xf32>
    %cst_8 = arith.constant 1.600000e+01 : f32
    %18 = vector.broadcast %cst_8 : f32 to vector<1x32xf32>
    %19 = arith.divf %17, %18 : vector<1x32xf32>
    %20 = vector.extract_strided_slice %11 {offsets = [0, 0], sizes = [16, 8], strides = [1, 1]} : vector<16x32xf32> to vector<16x8xf32>
    %21 = arith.truncf %20 : vector<16x8xf32> to vector<16x8xbf16>
    %22 = vector.extract_strided_slice %13 {offsets = [0, 0], sizes = [16, 8], strides = [1, 1]} : vector<16x32xf32> to vector<16x8xf32>
    %23 = arith.truncf %22 : vector<16x8xf32> to vector<16x8xbf16>
    %24 = vector.extract_strided_slice %15 {offsets = [0, 0], sizes = [8, 16], strides = [1, 1]} : vector<32x16xbf16> to vector<8x16xbf16>
    %cst_9 = arith.constant dense<0.000000e+00> : vector<16x16xf32>
    %25 = tpu.matmul %21, %24, %cst_9 {dimension_numbers = #tpu.dot_dimension_numbers<[1], [0], [0], [1], [0, 0, 1, 1], [], []>} : vector<16x8xbf16>, vector<8x16xbf16>, vector<16x16xf32> -> vector<16x16xf32>
    %26 = arith.mulf %25, %0 : vector<16x16xf32>
    %cst_10 = arith.constant dense<0.000000e+00> : vector<16xf32>
    %27 = vector.multi_reduction <add>, %26, %cst_10 [1] : vector<16x16xf32> to vector<16xf32>
    %28 = vector.shape_cast %27 : vector<16xf32> to vector<16x1xf32>
    %cst_11 = arith.constant 0xFF800000 : f32
    %29 = vector.broadcast %cst_11 : f32 to vector<16x16xf32>
    %30 = arith.select %2, %25, %29 : vector<16x16xi1>, vector<16x16xf32>
    %cst_12 = arith.constant dense<0xFF800000> : vector<16xf32>
    %31 = vector.multi_reduction <maximumf>, %30, %cst_12 [1] : vector<16x16xf32> to vector<16xf32>
    %32 = vector.shape_cast %31 : vector<16xf32> to vector<16x1xf32>
    %cst_13 = arith.constant 6.250000e-02 : f32
    %33 = vector.broadcast %cst_13 : f32 to vector<16x1xf32>
    %34 = arith.mulf %28, %33 : vector<16x1xf32>
    %35 = arith.subf %32, %34 : vector<16x1xf32>
    %36 = vector.shape_cast %35 : vector<16x1xf32> to vector<16x1xf32>
    %37 = vector.broadcast %36 : vector<16x1xf32> to vector<16x16xf32>
    %38 = tpu.transpose %37, [1, 0] : vector<16x16xf32> -> vector<16x16xf32>
    %39 = arith.cmpf ogt, %38, %37 : vector<16x16xf32>
    %40 = arith.cmpf oeq, %38, %37 : vector<16x16xf32>
    %41 = arith.andi %40, %5 : vector<16x16xi1>
    %42 = arith.ori %39, %41 : vector<16x16xi1>
    %cst_14 = arith.constant 1.000000e+00 : f32
    %cst_15 = arith.constant 0.000000e+00 : f32
    %43 = vector.broadcast %cst_14 : f32 to vector<16x16xf32>
    %44 = vector.broadcast %cst_15 : f32 to vector<16x16xf32>
    %45 = arith.select %42, %43, %44 : vector<16x16xi1>, vector<16x16xf32>
    %cst_16 = arith.constant dense<0.000000e+00> : vector<16xf32>
    %46 = vector.multi_reduction <add>, %45, %cst_16 [1] : vector<16x16xf32> to vector<16xf32>
    %47 = vector.shape_cast %46 : vector<16xf32> to vector<16x1xf32>
    %cst_17 = arith.constant 6.000000e+00 : f32
    %48 = vector.broadcast %cst_17 : f32 to vector<16x1xf32>
    %49 = arith.cmpf olt, %47, %48 : vector<16x1xf32>
    %cst_18 = arith.constant dense<0xFF800000> : vector<16xf32>
    %50 = vector.multi_reduction <maximumf>, %25, %cst_18 [1] : vector<16x16xf32> to vector<16xf32>
    %51 = vector.shape_cast %50 : vector<16xf32> to vector<16x1xf32>
    %52 = vector.broadcast %51 : vector<16x1xf32> to vector<16x16xf32>
    %53 = arith.subf %25, %52 : vector<16x16xf32>
    %54 = math.exp %53 : vector<16x16xf32>
    %cst_19 = arith.constant dense<0.000000e+00> : vector<16xf32>
    %55 = vector.multi_reduction <add>, %54, %cst_19 [1] : vector<16x16xf32> to vector<16xf32>
    %56 = vector.shape_cast %55 : vector<16xf32> to vector<16x1xf32>
    %57 = tpu.reciprocal %56 {approx = true} : vector<16x1xf32> -> vector<16x1xf32>
    %58 = vector.broadcast %57 : vector<16x1xf32> to vector<16x16xf32>
    %59 = arith.mulf %54, %58 : vector<16x16xf32>
    %60 = arith.truncf %59 : vector<16x16xf32> to vector<16x16xbf16>
    %cst_20 = arith.constant dense<0.000000e+00> : vector<16x8xf32>
    %61 = tpu.matmul %60, %23, %cst_20 {dimension_numbers = #tpu.dot_dimension_numbers<[1], [0], [0], [1], [0, 0, 1, 1], [], []>} : vector<16x16xbf16>, vector<16x8xbf16>, vector<16x8xf32> -> vector<16x8xf32>
    %62 = vector.extract_strided_slice %19 {offsets = [0, 0], sizes = [1, 8], strides = [1, 1]} : vector<1x32xf32> to vector<1x8xf32>
    %63 = vector.shape_cast %49 : vector<16x1xi1> to vector<16x1xi1>
    %64 = vector.broadcast %63 : vector<16x1xi1> to vector<16x8xi1>
    %65 = vector.shape_cast %62 : vector<1x8xf32> to vector<1x8xf32>
    %66 = vector.broadcast %65 : vector<1x8xf32> to vector<16x8xf32>
    %67 = arith.select %64, %61, %66 : vector<16x8xi1>, vector<16x8xf32>
    %68 = vector.extract_strided_slice %11 {offsets = [0, 8], sizes = [16, 8], strides = [1, 1]} : vector<16x32xf32> to vector<16x8xf32>
    %69 = arith.truncf %68 : vector<16x8xf32> to vector<16x8xbf16>
    %70 = vector.extract_strided_slice %13 {offsets = [0, 8], sizes = [16, 8], strides = [1, 1]} : vector<16x32xf32> to vector<16x8xf32>
    %71 = arith.truncf %70 : vector<16x8xf32> to vector<16x8xbf16>
    %72 = vector.extract_strided_slice %15 {offsets = [8, 0], sizes = [8, 16], strides = [1, 1]} : vector<32x16xbf16> to vector<8x16xbf16>
    %cst_21 = arith.constant dense<0.000000e+00> : vector<16x16xf32>
    %73 = tpu.matmul %69, %72, %cst_21 {dimension_numbers = #tpu.dot_dimension_numbers<[1], [0], [0], [1], [0, 0, 1, 1], [], []>} : vector<16x8xbf16>, vector<8x16xbf16>, vector<16x16xf32> -> vector<16x16xf32>
    %74 = arith.mulf %73, %0 : vector<16x16xf32>
    %cst_22 = arith.constant dense<0.000000e+00> : vector<16xf32>
    %75 = vector.multi_reduction <add>, %74, %cst_22 [1] : vector<16x16xf32> to vector<16xf32>
    %76 = vector.shape_cast %75 : vector<16xf32> to vector<16x1xf32>
    %cst_23 = arith.constant 0xFF800000 : f32
    %77 = vector.broadcast %cst_23 : f32 to vector<16x16xf32>
    %78 = arith.select %2, %73, %77 : vector<16x16xi1>, vector<16x16xf32>
    %cst_24 = arith.constant dense<0xFF800000> : vector<16xf32>
    %79 = vector.multi_reduction <maximumf>, %78, %cst_24 [1] : vector<16x16xf32> to vector<16xf32>
    %80 = vector.shape_cast %79 : vector<16xf32> to vector<16x1xf32>
    %cst_25 = arith.constant 6.250000e-02 : f32
    %81 = vector.broadcast %cst_25 : f32 to vector<16x1xf32>
    %82 = arith.mulf %76, %81 : vector<16x1xf32>
    %83 = arith.subf %80, %82 : vector<16x1xf32>
    %84 = vector.shape_cast %83 : vector<16x1xf32> to vector<16x1xf32>
    %85 = vector.broadcast %84 : vector<16x1xf32> to vector<16x16xf32>
    %86 = tpu.transpose %85, [1, 0] : vector<16x16xf32> -> vector<16x16xf32>
    %87 = arith.cmpf ogt, %86, %85 : vector<16x16xf32>
    %88 = arith.cmpf oeq, %86, %85 : vector<16x16xf32>
    %89 = arith.andi %88, %5 : vector<16x16xi1>
    %90 = arith.ori %87, %89 : vector<16x16xi1>
    %cst_26 = arith.constant 1.000000e+00 : f32
    %cst_27 = arith.constant 0.000000e+00 : f32
    %91 = vector.broadcast %cst_26 : f32 to vector<16x16xf32>
    %92 = vector.broadcast %cst_27 : f32 to vector<16x16xf32>
    %93 = arith.select %90, %91, %92 : vector<16x16xi1>, vector<16x16xf32>
    %cst_28 = arith.constant dense<0.000000e+00> : vector<16xf32>
    %94 = vector.multi_reduction <add>, %93, %cst_28 [1] : vector<16x16xf32> to vector<16xf32>
    %95 = vector.shape_cast %94 : vector<16xf32> to vector<16x1xf32>
    %cst_29 = arith.constant 6.000000e+00 : f32
    %96 = vector.broadcast %cst_29 : f32 to vector<16x1xf32>
    %97 = arith.cmpf olt, %95, %96 : vector<16x1xf32>
    %cst_30 = arith.constant dense<0xFF800000> : vector<16xf32>
    %98 = vector.multi_reduction <maximumf>, %73, %cst_30 [1] : vector<16x16xf32> to vector<16xf32>
    %99 = vector.shape_cast %98 : vector<16xf32> to vector<16x1xf32>
    %100 = vector.broadcast %99 : vector<16x1xf32> to vector<16x16xf32>
    %101 = arith.subf %73, %100 : vector<16x16xf32>
    %102 = math.exp %101 : vector<16x16xf32>
    %cst_31 = arith.constant dense<0.000000e+00> : vector<16xf32>
    %103 = vector.multi_reduction <add>, %102, %cst_31 [1] : vector<16x16xf32> to vector<16xf32>
    %104 = vector.shape_cast %103 : vector<16xf32> to vector<16x1xf32>
    %105 = tpu.reciprocal %104 {approx = true} : vector<16x1xf32> -> vector<16x1xf32>
    %106 = vector.broadcast %105 : vector<16x1xf32> to vector<16x16xf32>
    %107 = arith.mulf %102, %106 : vector<16x16xf32>
    %108 = arith.truncf %107 : vector<16x16xf32> to vector<16x16xbf16>
    %cst_32 = arith.constant dense<0.000000e+00> : vector<16x8xf32>
    %109 = tpu.matmul %108, %71, %cst_32 {dimension_numbers = #tpu.dot_dimension_numbers<[1], [0], [0], [1], [0, 0, 1, 1], [], []>} : vector<16x16xbf16>, vector<16x8xbf16>, vector<16x8xf32> -> vector<16x8xf32>
    %110 = vector.extract_strided_slice %19 {offsets = [0, 8], sizes = [1, 8], strides = [1, 1]} : vector<1x32xf32> to vector<1x8xf32>
    %111 = vector.shape_cast %97 : vector<16x1xi1> to vector<16x1xi1>
    %112 = vector.broadcast %111 : vector<16x1xi1> to vector<16x8xi1>
    %113 = vector.shape_cast %110 : vector<1x8xf32> to vector<1x8xf32>
    %114 = vector.broadcast %113 : vector<1x8xf32> to vector<16x8xf32>
    %115 = arith.select %112, %109, %114 : vector<16x8xi1>, vector<16x8xf32>
    %116 = vector.extract_strided_slice %11 {offsets = [0, 16], sizes = [16, 8], strides = [1, 1]} : vector<16x32xf32> to vector<16x8xf32>
    %117 = arith.truncf %116 : vector<16x8xf32> to vector<16x8xbf16>
    %118 = vector.extract_strided_slice %13 {offsets = [0, 16], sizes = [16, 8], strides = [1, 1]} : vector<16x32xf32> to vector<16x8xf32>
    %119 = arith.truncf %118 : vector<16x8xf32> to vector<16x8xbf16>
    %120 = vector.extract_strided_slice %15 {offsets = [16, 0], sizes = [8, 16], strides = [1, 1]} : vector<32x16xbf16> to vector<8x16xbf16>
    %cst_33 = arith.constant dense<0.000000e+00> : vector<16x16xf32>
    %121 = tpu.matmul %117, %120, %cst_33 {dimension_numbers = #tpu.dot_dimension_numbers<[1], [0], [0], [1], [0, 0, 1, 1], [], []>} : vector<16x8xbf16>, vector<8x16xbf16>, vector<16x16xf32> -> vector<16x16xf32>
    %122 = arith.mulf %121, %0 : vector<16x16xf32>
    %cst_34 = arith.constant dense<0.000000e+00> : vector<16xf32>
    %123 = vector.multi_reduction <add>, %122, %cst_34 [1] : vector<16x16xf32> to vector<16xf32>
    %124 = vector.shape_cast %123 : vector<16xf32> to vector<16x1xf32>
    %cst_35 = arith.constant 0xFF800000 : f32
    %125 = vector.broadcast %cst_35 : f32 to vector<16x16xf32>
    %126 = arith.select %2, %121, %125 : vector<16x16xi1>, vector<16x16xf32>
    %cst_36 = arith.constant dense<0xFF800000> : vector<16xf32>
    %127 = vector.multi_reduction <maximumf>, %126, %cst_36 [1] : vector<16x16xf32> to vector<16xf32>
    %128 = vector.shape_cast %127 : vector<16xf32> to vector<16x1xf32>
    %cst_37 = arith.constant 6.250000e-02 : f32
    %129 = vector.broadcast %cst_37 : f32 to vector<16x1xf32>
    %130 = arith.mulf %124, %129 : vector<16x1xf32>
    %131 = arith.subf %128, %130 : vector<16x1xf32>
    %132 = vector.shape_cast %131 : vector<16x1xf32> to vector<16x1xf32>
    %133 = vector.broadcast %132 : vector<16x1xf32> to vector<16x16xf32>
    %134 = tpu.transpose %133, [1, 0] : vector<16x16xf32> -> vector<16x16xf32>
    %135 = arith.cmpf ogt, %134, %133 : vector<16x16xf32>
    %136 = arith.cmpf oeq, %134, %133 : vector<16x16xf32>
    %137 = arith.andi %136, %5 : vector<16x16xi1>
    %138 = arith.ori %135, %137 : vector<16x16xi1>
    %cst_38 = arith.constant 1.000000e+00 : f32
    %cst_39 = arith.constant 0.000000e+00 : f32
    %139 = vector.broadcast %cst_38 : f32 to vector<16x16xf32>
    %140 = vector.broadcast %cst_39 : f32 to vector<16x16xf32>
    %141 = arith.select %138, %139, %140 : vector<16x16xi1>, vector<16x16xf32>
    %cst_40 = arith.constant dense<0.000000e+00> : vector<16xf32>
    %142 = vector.multi_reduction <add>, %141, %cst_40 [1] : vector<16x16xf32> to vector<16xf32>
    %143 = vector.shape_cast %142 : vector<16xf32> to vector<16x1xf32>
    %cst_41 = arith.constant 6.000000e+00 : f32
    %144 = vector.broadcast %cst_41 : f32 to vector<16x1xf32>
    %145 = arith.cmpf olt, %143, %144 : vector<16x1xf32>
    %cst_42 = arith.constant dense<0xFF800000> : vector<16xf32>
    %146 = vector.multi_reduction <maximumf>, %121, %cst_42 [1] : vector<16x16xf32> to vector<16xf32>
    %147 = vector.shape_cast %146 : vector<16xf32> to vector<16x1xf32>
    %148 = vector.broadcast %147 : vector<16x1xf32> to vector<16x16xf32>
    %149 = arith.subf %121, %148 : vector<16x16xf32>
    %150 = math.exp %149 : vector<16x16xf32>
    %cst_43 = arith.constant dense<0.000000e+00> : vector<16xf32>
    %151 = vector.multi_reduction <add>, %150, %cst_43 [1] : vector<16x16xf32> to vector<16xf32>
    %152 = vector.shape_cast %151 : vector<16xf32> to vector<16x1xf32>
    %153 = tpu.reciprocal %152 {approx = true} : vector<16x1xf32> -> vector<16x1xf32>
    %154 = vector.broadcast %153 : vector<16x1xf32> to vector<16x16xf32>
    %155 = arith.mulf %150, %154 : vector<16x16xf32>
    %156 = arith.truncf %155 : vector<16x16xf32> to vector<16x16xbf16>
    %cst_44 = arith.constant dense<0.000000e+00> : vector<16x8xf32>
    %157 = tpu.matmul %156, %119, %cst_44 {dimension_numbers = #tpu.dot_dimension_numbers<[1], [0], [0], [1], [0, 0, 1, 1], [], []>} : vector<16x16xbf16>, vector<16x8xbf16>, vector<16x8xf32> -> vector<16x8xf32>
    %158 = vector.extract_strided_slice %19 {offsets = [0, 16], sizes = [1, 8], strides = [1, 1]} : vector<1x32xf32> to vector<1x8xf32>
    %159 = vector.shape_cast %145 : vector<16x1xi1> to vector<16x1xi1>
    %160 = vector.broadcast %159 : vector<16x1xi1> to vector<16x8xi1>
    %161 = vector.shape_cast %158 : vector<1x8xf32> to vector<1x8xf32>
    %162 = vector.broadcast %161 : vector<1x8xf32> to vector<16x8xf32>
    %163 = arith.select %160, %157, %162 : vector<16x8xi1>, vector<16x8xf32>
    %164 = vector.extract_strided_slice %11 {offsets = [0, 24], sizes = [16, 8], strides = [1, 1]} : vector<16x32xf32> to vector<16x8xf32>
    %165 = arith.truncf %164 : vector<16x8xf32> to vector<16x8xbf16>
    %166 = vector.extract_strided_slice %13 {offsets = [0, 24], sizes = [16, 8], strides = [1, 1]} : vector<16x32xf32> to vector<16x8xf32>
    %167 = arith.truncf %166 : vector<16x8xf32> to vector<16x8xbf16>
    %168 = vector.extract_strided_slice %15 {offsets = [24, 0], sizes = [8, 16], strides = [1, 1]} : vector<32x16xbf16> to vector<8x16xbf16>
    %cst_45 = arith.constant dense<0.000000e+00> : vector<16x16xf32>
    %169 = tpu.matmul %165, %168, %cst_45 {dimension_numbers = #tpu.dot_dimension_numbers<[1], [0], [0], [1], [0, 0, 1, 1], [], []>} : vector<16x8xbf16>, vector<8x16xbf16>, vector<16x16xf32> -> vector<16x16xf32>
    %170 = arith.mulf %169, %0 : vector<16x16xf32>
    %cst_46 = arith.constant dense<0.000000e+00> : vector<16xf32>
    %171 = vector.multi_reduction <add>, %170, %cst_46 [1] : vector<16x16xf32> to vector<16xf32>
    %172 = vector.shape_cast %171 : vector<16xf32> to vector<16x1xf32>
    %cst_47 = arith.constant 0xFF800000 : f32
    %173 = vector.broadcast %cst_47 : f32 to vector<16x16xf32>
    %174 = arith.select %2, %169, %173 : vector<16x16xi1>, vector<16x16xf32>
    %cst_48 = arith.constant dense<0xFF800000> : vector<16xf32>
    %175 = vector.multi_reduction <maximumf>, %174, %cst_48 [1] : vector<16x16xf32> to vector<16xf32>
    %176 = vector.shape_cast %175 : vector<16xf32> to vector<16x1xf32>
    %cst_49 = arith.constant 6.250000e-02 : f32
    %177 = vector.broadcast %cst_49 : f32 to vector<16x1xf32>
    %178 = arith.mulf %172, %177 : vector<16x1xf32>
    %179 = arith.subf %176, %178 : vector<16x1xf32>
    %180 = vector.shape_cast %179 : vector<16x1xf32> to vector<16x1xf32>
    %181 = vector.broadcast %180 : vector<16x1xf32> to vector<16x16xf32>
    %182 = tpu.transpose %181, [1, 0] : vector<16x16xf32> -> vector<16x16xf32>
    %183 = arith.cmpf ogt, %182, %181 : vector<16x16xf32>
    %184 = arith.cmpf oeq, %182, %181 : vector<16x16xf32>
    %185 = arith.andi %184, %5 : vector<16x16xi1>
    %186 = arith.ori %183, %185 : vector<16x16xi1>
    %cst_50 = arith.constant 1.000000e+00 : f32
    %cst_51 = arith.constant 0.000000e+00 : f32
    %187 = vector.broadcast %cst_50 : f32 to vector<16x16xf32>
    %188 = vector.broadcast %cst_51 : f32 to vector<16x16xf32>
    %189 = arith.select %186, %187, %188 : vector<16x16xi1>, vector<16x16xf32>
    %cst_52 = arith.constant dense<0.000000e+00> : vector<16xf32>
    %190 = vector.multi_reduction <add>, %189, %cst_52 [1] : vector<16x16xf32> to vector<16xf32>
    %191 = vector.shape_cast %190 : vector<16xf32> to vector<16x1xf32>
    %cst_53 = arith.constant 6.000000e+00 : f32
    %192 = vector.broadcast %cst_53 : f32 to vector<16x1xf32>
    %193 = arith.cmpf olt, %191, %192 : vector<16x1xf32>
    %cst_54 = arith.constant dense<0xFF800000> : vector<16xf32>
    %194 = vector.multi_reduction <maximumf>, %169, %cst_54 [1] : vector<16x16xf32> to vector<16xf32>
    %195 = vector.shape_cast %194 : vector<16xf32> to vector<16x1xf32>
    %196 = vector.broadcast %195 : vector<16x1xf32> to vector<16x16xf32>
    %197 = arith.subf %169, %196 : vector<16x16xf32>
    %198 = math.exp %197 : vector<16x16xf32>
    %cst_55 = arith.constant dense<0.000000e+00> : vector<16xf32>
    %199 = vector.multi_reduction <add>, %198, %cst_55 [1] : vector<16x16xf32> to vector<16xf32>
    %200 = vector.shape_cast %199 : vector<16xf32> to vector<16x1xf32>
    %201 = tpu.reciprocal %200 {approx = true} : vector<16x1xf32> -> vector<16x1xf32>
    %202 = vector.broadcast %201 : vector<16x1xf32> to vector<16x16xf32>
    %203 = arith.mulf %198, %202 : vector<16x16xf32>
    %204 = arith.truncf %203 : vector<16x16xf32> to vector<16x16xbf16>
    %cst_56 = arith.constant dense<0.000000e+00> : vector<16x8xf32>
    %205 = tpu.matmul %204, %167, %cst_56 {dimension_numbers = #tpu.dot_dimension_numbers<[1], [0], [0], [1], [0, 0, 1, 1], [], []>} : vector<16x16xbf16>, vector<16x8xbf16>, vector<16x8xf32> -> vector<16x8xf32>
    %206 = vector.extract_strided_slice %19 {offsets = [0, 24], sizes = [1, 8], strides = [1, 1]} : vector<1x32xf32> to vector<1x8xf32>
    %207 = vector.shape_cast %193 : vector<16x1xi1> to vector<16x1xi1>
    %208 = vector.broadcast %207 : vector<16x1xi1> to vector<16x8xi1>
    %209 = vector.shape_cast %206 : vector<1x8xf32> to vector<1x8xf32>
    %210 = vector.broadcast %209 : vector<1x8xf32> to vector<16x8xf32>
    %211 = arith.select %208, %205, %210 : vector<16x8xi1>, vector<16x8xf32>
    %212 = tpu.concatenate %67, %115, %163, %211 in 1 : vector<16x8xf32>, vector<16x8xf32>, vector<16x8xf32>, vector<16x8xf32> -> vector<16x32xf32>
    %213 = arith.truncf %212 : vector<16x32xf32> to vector<16x32xbf16>
    %c0_57 = arith.constant 0 : index
    %c0_58 = arith.constant 0 : index
    %214 = vector.load %arg4[%c0_57, %c0_58] : memref<32x32xbf16, #tpu.memory_space<vmem>>, vector<32x32xbf16>
    %cst_59 = arith.constant dense<0.000000e+00> : vector<16x32xf32>
    %215 = tpu.matmul %213, %214, %cst_59 {dimension_numbers = #tpu.dot_dimension_numbers<[1], [0], [0], [1], [0, 0, 1, 1], [], []>} : vector<16x32xbf16>, vector<32x32xbf16>, vector<16x32xf32> -> vector<16x32xf32>
    %c0_60 = arith.constant 0 : index
    %c0_61 = arith.constant 0 : index
    %216 = vector.load %arg5[%c0_60, %c0_61] : memref<1x32xf32, #tpu.memory_space<vmem>>, vector<1x32xf32>
    %217 = vector.broadcast %216 : vector<1x32xf32> to vector<16x32xf32>
    %218 = arith.addf %215, %217 : vector<16x32xf32>
    %219 = arith.addf %218, %7 : vector<16x32xf32>
    %cst_62 = arith.constant dense<0.000000e+00> : vector<16xf32>
    %220 = vector.multi_reduction <add>, %219, %cst_62 [1] : vector<16x32xf32> to vector<16xf32>
    %221 = vector.shape_cast %220 : vector<16xf32> to vector<16x1xf32>
    %cst_63 = arith.constant 3.200000e+01 : f32
    %222 = vector.broadcast %cst_63 : f32 to vector<16x1xf32>
    %223 = arith.divf %221, %222 : vector<16x1xf32>
    %224 = vector.broadcast %223 : vector<16x1xf32> to vector<16x32xf32>
    %225 = arith.subf %219, %224 : vector<16x32xf32>
    %226 = arith.mulf %225, %225 : vector<16x32xf32>
    %cst_64 = arith.constant dense<0.000000e+00> : vector<16xf32>
    %227 = vector.multi_reduction <add>, %226, %cst_64 [1] : vector<16x32xf32> to vector<16xf32>
    %228 = vector.shape_cast %227 : vector<16xf32> to vector<16x1xf32>
    %cst_65 = arith.constant 3.200000e+01 : f32
    %229 = vector.broadcast %cst_65 : f32 to vector<16x1xf32>
    %230 = arith.divf %228, %229 : vector<16x1xf32>
    %231 = vector.broadcast %223 : vector<16x1xf32> to vector<16x32xf32>
    %232 = arith.subf %219, %231 : vector<16x32xf32>
    %cst_66 = arith.constant 9.99999997E-7 : f32
    %233 = vector.broadcast %cst_66 : f32 to vector<16x1xf32>
    %234 = arith.addf %230, %233 : vector<16x1xf32>
    %235 = math.rsqrt %234 : vector<16x1xf32>
    %236 = vector.broadcast %235 : vector<16x1xf32> to vector<16x32xf32>
    %237 = arith.mulf %232, %236 : vector<16x32xf32>
    %c0_67 = arith.constant 0 : index
    %c0_68 = arith.constant 0 : index
    %238 = vector.load %arg6[%c0_67, %c0_68] : memref<1x32xf32, #tpu.memory_space<vmem>>, vector<1x32xf32>
    %239 = vector.broadcast %238 : vector<1x32xf32> to vector<16x32xf32>
    %240 = arith.mulf %237, %239 : vector<16x32xf32>
    %c0_69 = arith.constant 0 : index
    %c0_70 = arith.constant 0 : index
    %241 = vector.load %arg7[%c0_69, %c0_70] : memref<1x32xf32, #tpu.memory_space<vmem>>, vector<1x32xf32>
    %242 = vector.broadcast %241 : vector<1x32xf32> to vector<16x32xf32>
    %243 = arith.addf %240, %242 : vector<16x32xf32>
    %244 = vector.shape_cast %243 : vector<16x32xf32> to vector<1x16x32xf32>
    %c0_71 = arith.constant 0 : index
    %c0_72 = arith.constant 0 : index
    %c0_73 = arith.constant 0 : index
    %245 = vector.load %arg8[%c0_71, %c0_72, %c0_73] : memref<1x16x32xf32, #tpu.memory_space<vmem>>, vector<1x16x32xf32>
    tpu.vector_store %arg8[%c0_71, %c0_72, %c0_73], %244 {strides = array<i32>} : memref<1x16x32xf32, #tpu.memory_space<vmem>>, vector<1x16x32xf32>,
    return
  }
  func.func @transform_0(%arg0: i32) -> (i32, i32) {
    %c0_i32 = arith.constant 0 : i32
    %c0_i32_0 = arith.constant 0 : i32
    %c0_i32_1 = arith.constant 0 : i32
    return %c0_i32, %c0_i32_0 : i32, i32
  }
  func.func @transform_1(%arg0: i32) -> (i32, i32, i32) {
    %c0_i32 = arith.constant 0 : i32
    %c0_i32_0 = arith.constant 0 : i32
    %c0_i32_1 = arith.constant 0 : i32
    return %arg0, %c0_i32, %c0_i32_0 : i32, i32, i32
  }
  func.func @transform_2(%arg0: i32) -> (i32, i32) {
    %c0_i32 = arith.constant 0 : i32
    %c0_i32_0 = arith.constant 0 : i32
    %c0_i32_1 = arith.constant 0 : i32
    return %c0_i32, %c0_i32_0 : i32, i32
  }
  func.func @transform_3(%arg0: i32) -> (i32, i32) {
    %c0_i32 = arith.constant 0 : i32
    %c0_i32_0 = arith.constant 0 : i32
    %c0_i32_1 = arith.constant 0 : i32
    return %c0_i32, %c0_i32_0 : i32, i32
  }
  func.func @transform_4(%arg0: i32) -> (i32, i32) {
    %c0_i32 = arith.constant 0 : i32
    %c0_i32_0 = arith.constant 0 : i32
    %c0_i32_1 = arith.constant 0 : i32
    return %c0_i32, %c0_i32_0 : i32, i32
  }
  func.func @transform_5(%arg0: i32) -> (i32, i32) {
    %c0_i32 = arith.constant 0 : i32
    %c0_i32_0 = arith.constant 0 : i32
    %c0_i32_1 = arith.constant 0 : i32
    return %c0_i32, %c0_i32_0 : i32, i32
  }
  func.func @transform_6(%arg0: i32) -> (i32, i32) {
    %c0_i32 = arith.constant 0 : i32
    %c0_i32_0 = arith.constant 0 : i32
    %c0_i32_1 = arith.constant 0 : i32
    return %c0_i32, %c0_i32_0 : i32, i32
  }
  func.func @transform_7(%arg0: i32) -> (i32, i32, i32) {
    %c0_i32 = arith.constant 0 : i32
    %c0_i32_0 = arith.constant 0 : i32
    %c0_i32_1 = arith.constant 0 : i32
    return %arg0, %c0_i32, %c0_i32_0 : i32, i32, i32
  }
}

</mosaic_0001>

<llo_original>
// kernel: prob_sparse_attention.1
$region0: #{prob_sparse_attention.1}
  #allocation0 [shape = 'u32[]', space=smem, size = 0x4, offset = 0x4, fixed_abs, tag = 'smem constant byte address 0x4 - core index']
  #allocation1 [shape = 'u32[144,128]{1,0:T(1,128)}', space=vmem, size = 0x12000, scoped, tag = 'internal scratch']
  %s0 = inlined_call_operand.vmem [shape: f32[16,16], index: 0, kind: input, shape index: {}]
  %s1 = inlined_call_operand.vmem [shape: f32[2,16,32], index: 1, kind: input, shape index: {}]
  %s2 = inlined_call_operand.vmem [shape: bf16[32,96], index: 2, kind: input, shape index: {}]
  %s3 = inlined_call_operand.vmem [shape: bf16[32,32], index: 3, kind: input, shape index: {}]
  %s4 = inlined_call_operand.vmem [shape: f32[1,32], index: 4, kind: input, shape index: {}]
  %s5 = inlined_call_operand.vmem [shape: f32[1,32], index: 5, kind: input, shape index: {}]
  %s6 = inlined_call_operand.vmem [shape: f32[1,32], index: 6, kind: input, shape index: {}]
  %s7 = inlined_call_operand.hbm [shape: f32[2,16,32], index: 7, kind: output, shape index: {}]
  %s8 = sld [smem:[#allocation0]]
  $region61: #{prob_sparse_attention.1} parent=0
    _
  %s10 = ssub.s32 1, %s8
  %s11 = scalar_select 0, %s10, %s8
  $region1: #{prob_sparse_attention.1} parent=0
    #allocation2 [shape = 'u8[16384]{0}', space=vmem, size = 0x4000, scoped, tag = 'output window, operand 0']
    #allocation3 [shape = 's32[2]{0}', space=sflag, size = 0x8, scoped, tag = 'scoped memory for prob_sparse_attention.1']
    %12 = vsyncpa [#allocation3], 0
    %s13 = scalar_lea.sflag [#allocation3], 1
    %14 = vsyncpa %s13, 0
    loop: start=0, step=1, limit=4
    $region2: #{prob_sparse_attention.1} parent=1 // loop_pre_header
      _
    $region3: #{prob_sparse_attention.1} parent=1 // loop_header
      %s16 = sphi 0, %s20
      %p17 = scmp.ge.s32.totalorder %s16, 4
      %s24 = sphi 0, %s24
      %s26 = sphi 0, %s24
      %s27 = sphi 0, %s26
      %s41 = sphi 0, %s27
      %s47 = sphi 0, %s49
      %s50 = sphi 0, %s47
      %s51 = sphi 0, %s50
      %s67 = sphi 0, %s51
      %s71 = sphi 0, %s71
      %s73 = sphi 0, %s71
      %s74 = sphi 0, %s73
      %s88 = sphi 0, %s74
      %s92 = sphi 0, %s92
      %s94 = sphi 0, %s92
      %s95 = sphi 0, %s94
      %s109 = sphi 0, %s95
      %s113 = sphi 0, %s113
      %s115 = sphi 0, %s113
      %s116 = sphi 0, %s115
      %s130 = sphi 0, %s116
      %s134 = sphi 0, %s134
      %s136 = sphi 0, %s134
      %s137 = sphi 0, %s136
      %s151 = sphi 0, %s137
      %s155 = sphi 0, %s155
      %s157 = sphi 0, %s155
      %s158 = sphi 0, %s157
      %s172 = sphi 0, %s158
      %s178 = sphi 0, %s180
      %s181 = sphi 0, %s178
      %s182 = sphi 0, %s181
      %s198 = sphi 0, %s182
    $region4: #{prob_sparse_attention.1} parent=1 // loop_header_branch
      %19 = sbr.rel (%p17) target = $region8
    $region5: #{prob_sparse_attention.1} parent=1 // loop_body
      %s21 = ssub.s32 %s16, 1
      %s22 = ssub.s32 %s16, 2
      %s23 = sadd.s32 %s16, 1
      %s25 = sadd.s32 %s24, 1
      %p28 = scmp.eq.s32.totalorder %s16, 1
      %p29 = scmp.ne.s32.totalorder %s24, %s26
      %p30 = scmp.eq.s32.totalorder %s16, 0
      %p31 = por %p29, %p30
      %p32 = scmp.ne.s32.totalorder %s24, %s26
      %p33 = scmp.eq.s32.totalorder %s21, 1
      %p34 = por %p32, %p33
      %p35 = scmp.ne.s32.totalorder %s26, %s27
      %p36 = scmp.eq.s32.totalorder %s21, 0
      %p37 = por %p35, %p36
      %p38 = scmp.ne.s32.totalorder %s26, %s27
      %p39 = scmp.eq.s32.totalorder %s22, 1
      %p40 = por %p38, %p39
      %p42 = scmp.ne.s32.totalorder %s27, %s41
      %p43 = scmp.eq.s32.totalorder %s22, 0
      %p44 = por %p42, %p43
      %s45 = ssub.s32 %s16, %s23
      %p46 = scmp.eq.s32.totalorder %s45, 0
      %s48 = sadd.s32 %s47, 1
      %s49 = scalar_select %p46, %s47, %s48
      %p52 = pneg %p46
      %p53 = scmp.eq.s32.totalorder %s16, 1
      %p54 = por %p52, %p53
      %p55 = scmp.ne.s32.totalorder %s47, %s50
      %p56 = scmp.eq.s32.totalorder %s16, 0
      %p57 = por %p55, %p56
      %p58 = scmp.ne.s32.totalorder %s47, %s50
      %p59 = scmp.eq.s32.totalorder %s21, 1
      %p60 = por %p58, %p59
      %p61 = scmp.ne.s32.totalorder %s50, %s51
      %p62 = scmp.eq.s32.totalorder %s21, 0
      %p63 = por %p61, %p62
      %p64 = scmp.ne.s32.totalorder %s50, %s51
      %p65 = scmp.eq.s32.totalorder %s22, 1
      %p66 = por %p64, %p65
      %p68 = scmp.ne.s32.totalorder %s51, %s67
      %p69 = scmp.eq.s32.totalorder %s22, 0
      %p70 = por %p68, %p69
      %s72 = sadd.s32 %s71, 1
      %p75 = scmp.eq.s32.totalorder %s16, 1
      %p76 = scmp.ne.s32.totalorder %s71, %s73
      %p77 = scmp.eq.s32.totalorder %s16, 0
      %p78 = por %p76, %p77
      %p79 = scmp.ne.s32.totalorder %s71, %s73
      %p80 = scmp.eq.s32.totalorder %s21, 1
      %p81 = por %p79, %p80
      %p82 = scmp.ne.s32.totalorder %s73, %s74
      %p83 = scmp.eq.s32.totalorder %s21, 0
      %p84 = por %p82, %p83
      %p85 = scmp.ne.s32.totalorder %s73, %s74
      %p86 = scmp.eq.s32.totalorder %s22, 1
      %p87 = por %p85, %p86
      %p89 = scmp.ne.s32.totalorder %s74, %s88
      %p90 = scmp.eq.s32.totalorder %s22, 0
      %p91 = por %p89, %p90
      %s93 = sadd.s32 %s92, 1
      %p96 = scmp.eq.s32.totalorder %s16, 1
      %p97 = scmp.ne.s32.totalorder %s92, %s94
      %p98 = scmp.eq.s32.totalorder %s16, 0
      %p99 = por %p97, %p98
      %p100 = scmp.ne.s32.totalorder %s92, %s94
      %p101 = scmp.eq.s32.totalorder %s21, 1
      %p102 = por %p100, %p101
      %p103 = scmp.ne.s32.totalorder %s94, %s95
      %p104 = scmp.eq.s32.totalorder %s21, 0
      %p105 = por %p103, %p104
      %p106 = scmp.ne.s32.totalorder %s94, %s95
      %p107 = scmp.eq.s32.totalorder %s22, 1
      %p108 = por %p106, %p107
      %p110 = scmp.ne.s32.totalorder %s95, %s109
      %p111 = scmp.eq.s32.totalorder %s22, 0
      %p112 = por %p110, %p111
      %s114 = sadd.s32 %s113, 1
      %p117 = scmp.eq.s32.totalorder %s16, 1
      %p118 = scmp.ne.s32.totalorder %s113, %s115
      %p119 = scmp.eq.s32.totalorder %s16, 0
      %p120 = por %p118, %p119
      %p121 = scmp.ne.s32.totalorder %s113, %s115
      %p122 = scmp.eq.s32.totalorder %s21, 1
      %p123 = por %p121, %p122
      %p124 = scmp.ne.s32.totalorder %s115, %s116
      %p125 = scmp.eq.s32.totalorder %s21, 0
      %p126 = por %p124, %p125
      %p127 = scmp.ne.s32.totalorder %s115, %s116
      %p128 = scmp.eq.s32.totalorder %s22, 1
      %p129 = por %p127, %p128
      %p131 = scmp.ne.s32.totalorder %s116, %s130
      %p132 = scmp.eq.s32.totalorder %s22, 0
      %p133 = por %p131, %p132
      %s135 = sadd.s32 %s134, 1
      %p138 = scmp.eq.s32.totalorder %s16, 1
      %p139 = scmp.ne.s32.totalorder %s134, %s136
      %p140 = scmp.eq.s32.totalorder %s16, 0
      %p141 = por %p139, %p140
      %p142 = scmp.ne.s32.totalorder %s134, %s136
      %p143 = scmp.eq.s32.totalorder %s21, 1
      %p144 = por %p142, %p143
      %p145 = scmp.ne.s32.totalorder %s136, %s137
      %p146 = scmp.eq.s32.totalorder %s21, 0
      %p147 = por %p145, %p146
      %p148 = scmp.ne.s32.totalorder %s136, %s137
      %p149 = scmp.eq.s32.totalorder %s22, 1
      %p150 = por %p148, %p149
      %p152 = scmp.ne.s32.totalorder %s137, %s151
      %p153 = scmp.eq.s32.totalorder %s22, 0
      %p154 = por %p152, %p153
      %s156 = sadd.s32 %s155, 1
      %p159 = scmp.eq.s32.totalorder %s16, 1
      %p160 = scmp.ne.s32.totalorder %s155, %s157
      %p161 = scmp.eq.s32.totalorder %s16, 0
      %p162 = por %p160, %p161
      %p163 = scmp.ne.s32.totalorder %s155, %s157
      %p164 = scmp.eq.s32.totalorder %s21, 1
      %p165 = por %p163, %p164
      %p166 = scmp.ne.s32.totalorder %s157, %s158
      %p167 = scmp.eq.s32.totalorder %s21, 0
      %p168 = por %p166, %p167
      %p169 = scmp.ne.s32.totalorder %s157, %s158
      %p170 = scmp.eq.s32.totalorder %s22, 1
      %p171 = por %p169, %p170
      %p173 = scmp.ne.s32.totalorder %s158, %s172
      %p174 = scmp.eq.s32.totalorder %s22, 0
      %p175 = por %p173, %p174
      %s176 = ssub.s32 %s16, %s23
      %p177 = scmp.eq.s32.totalorder %s176, 0
      %s179 = sadd.s32 %s178, 1
      %s180 = scalar_select %p177, %s178, %s179
      %p183 = pneg %p177
      %p184 = scmp.eq.s32.totalorder %s16, 1
      %p185 = por %p183, %p184
      %p186 = scmp.ne.s32.totalorder %s178, %s181
      %p187 = scmp.eq.s32.totalorder %s16, 0
      %p188 = por %p186, %p187
      %p189 = scmp.ne.s32.totalorder %s178, %s181
      %p190 = scmp.eq.s32.totalorder %s21, 1
      %p191 = por %p189, %p190
      %p192 = scmp.ne.s32.totalorder %s181, %s182
      %p193 = scmp.eq.s32.totalorder %s21, 0
      %p194 = por %p192, %p193
      %p195 = scmp.ne.s32.totalorder %s181, %s182
      %p196 = scmp.eq.s32.totalorder %s22, 1
      %p197 = por %p195, %p196
      %p199 = scmp.ne.s32.totalorder %s182, %s198
      %p200 = scmp.eq.s32.totalorder %s22, 0
      %p201 = por %p199, %p200
      %p202 = scmp.le.s32.totalorder 1, %s16
      %p203 = scmp.lt.s32.totalorder %s16, 3
      %p204 = pnand %p202, %p203
      %p205 = pneg %p204
      // Predicated region
      $region9: #{prob_sparse_attention.1} parent=5 // pred_check
        _
      $region10: #{prob_sparse_attention.1} parent=5 // pred_check_branch
        %207 = sbr.rel (%p204) target = $region12
      $region11: #{prob_sparse_attention.1} parent=5 // pred_region
        %s208 = ssub.s32 %s16, 1
        // Predicated region
        $region13: #{prob_sparse_attention.1} parent=11 // pred_check
          %p209 = pneg %p37
        $region14: #{prob_sparse_attention.1} parent=11 // pred_check_branch
          %211 = sbr.rel (%p209) target = $region16
        $region15: #{prob_sparse_attention.1} parent=11 // pred_region
          _
        $region16: #{prob_sparse_attention.1} parent=11 // pred_fallthru
          _
        // Predicated region
        $region17: #{prob_sparse_attention.1} parent=11 // pred_check
          %p212 = pneg %p84
        $region18: #{prob_sparse_attention.1} parent=11 // pred_check_branch
          %214 = sbr.rel (%p212) target = $region20
        $region19: #{prob_sparse_attention.1} parent=11 // pred_region
          _
        $region20: #{prob_sparse_attention.1} parent=11 // pred_fallthru
          _
        // Predicated region
        $region21: #{prob_sparse_attention.1} parent=11 // pred_check
          %p215 = pneg %p105
        $region22: #{prob_sparse_attention.1} parent=11 // pred_check_branch
          %217 = sbr.rel (%p215) target = $region24
        $region23: #{prob_sparse_attention.1} parent=11 // pred_region
          _
        $region24: #{prob_sparse_attention.1} parent=11 // pred_fallthru
          _
        // Predicated region
        $region25: #{prob_sparse_attention.1} parent=11 // pred_check
          %p218 = pneg %p126
        $region26: #{prob_sparse_attention.1} parent=11 // pred_check_branch
          %220 = sbr.rel (%p218) target = $region28
        $region27: #{prob_sparse_attention.1} parent=11 // pred_region
          _
        $region28: #{prob_sparse_attention.1} parent=11 // pred_fallthru
          _
        // Predicated region
        $region29: #{prob_sparse_attention.1} parent=11 // pred_check
          %p221 = pneg %p147
        $region30: #{prob_sparse_attention.1} parent=11 // pred_check_branch
          %223 = sbr.rel (%p221) target = $region32
        $region31: #{prob_sparse_attention.1} parent=11 // pred_region
          _
        $region32: #{prob_sparse_attention.1} parent=11 // pred_fallthru
          _
        // Predicated region
        $region33: #{prob_sparse_attention.1} parent=11 // pred_check
          %p224 = pneg %p168
        $region34: #{prob_sparse_attention.1} parent=11 // pred_check_branch
          %226 = sbr.rel (%p224) target = $region36
        $region35: #{prob_sparse_attention.1} parent=11 // pred_region
          _
        $region36: #{prob_sparse_attention.1} parent=11 // pred_fallthru
          _
      $region12: #{prob_sparse_attention.1} parent=5 // pred_fallthru
        _
      %p227 = scmp.lt.s32.totalorder %s16, 2
      // Predicated region
      $region37: #{prob_sparse_attention.1} parent=5 // pred_check
        %p228 = pneg %p227
      $region38: #{prob_sparse_attention.1} parent=5 // pred_check_branch
        %230 = sbr.rel (%p228) target = $region40
      $region39: #{prob_sparse_attention.1} parent=5 // pred_region
        // Predicated region
        $region41: #{prob_sparse_attention.1} parent=39 // pred_check
          %p231 = pneg %p57
        $region42: #{prob_sparse_attention.1} parent=39 // pred_check_branch
          %233 = sbr.rel (%p231) target = $region44
        $region43: #{prob_sparse_attention.1} parent=39 // pred_region
          %p234 = scmp.lt.s32.totalorder %s16, 1
          %s235 = scalar_select %p234, %s16, 1
          %s236 = smul.addr %s235, 2
          %s237 = smul.addr %s236, 8
          %s238 = scalar_lea.vmem %s1, %s237
        $region44: #{prob_sparse_attention.1} parent=39 // pred_fallthru
          _
      $region40: #{prob_sparse_attention.1} parent=5 // pred_fallthru
        _
      %p239 = scmp.le.s32.totalorder 1, %s16
      %p240 = scmp.lt.s32.totalorder %s16, 3
      %p241 = pnand %p239, %p240
      %p242 = pneg %p241
      // Predicated region
      $region45: #{prob_sparse_attention.1} parent=5 // pred_check
        _
      $region46: #{prob_sparse_attention.1} parent=5 // pred_check_branch
        %244 = sbr.rel (%p241) target = $region48
      $region47: #{prob_sparse_attention.1} parent=5 // pred_region
        %s245 = ssub.s32 %s16, 1
        %p246 = pneg %p37
        %p247 = pneg %p34
        %p248 = scmp.lt.s32.totalorder %s21, 1
        %s249 = scalar_select %p248, %s21, 1
        %s250 = smul.addr %s249, 2
        %s251 = smul.addr %s250, 8
        %s252 = scalar_lea.vmem %s1, %s251
        %p253 = pneg %p63
        %p254 = pneg %p60
        %p255 = pneg %p84
        %p256 = pneg %p81
        %p257 = pneg %p105
        %p258 = pneg %p102
        %p259 = pneg %p126
        %p260 = pneg %p123
        %p261 = pneg %p147
        %p262 = pneg %p144
        %p263 = pneg %p168
        %p264 = pneg %p165
        %p265 = pneg %p194
        %p266 = pneg %p191
        %s267 = sand.u32 %s181, 1
        %s268 = scalar_lea.sflag [#allocation3], %s267
        %s269 = sand.u32 %s181, 1
        %s270 = smul.addr %s269, 16
        %s271 = scalar_lea.vmem [#allocation2], %s270
        %p272 = scmp.lt.s32.totalorder %s21, 1
        %s273 = scalar_select %p272, %s21, 1
        %s274 = smul.addr %s273, 2
        %s275 = smul.addr %s274, 8
        %s276 = scalar_lea.vmem %s1, %s275
        %v278 = vld [vmem:[%s0] sm:$0xff]
        %v279 = vld [vmem:[%s0 + $0x8] sm:$0xff]
        %vm280 = vcmp.gt.f32.partialorder %v278, 0.0
        %vm281 = vcmp.gt.f32.partialorder %v279, 0.0
        %v282 = vlaneseq
        %v283 = vand.u32 %v282, 127
        %v284 = vlaneseq
        %v285 = vshrl.u32 %v284, 7
        %v286 = vadd.s32 %v285, 8
        %vm287 = vcmp.lt.s32.totalorder %v283, %v285
        %vm288 = vcmp.lt.s32.totalorder %v283, %v286
        %v289 = vld [vmem:[%s276] sm:$0xff]
        %v290 = vld [vmem:[%s276 + $0x8] sm:$0xff]
        %v291 = vpack.c.bf16 %v290, %v289
        %v292 = vld [vmem:[%s2] sm:$0xf]
        %v293 = vld [vmem:[%s2 + $0x4] sm:$0xf]
        %v294 = vld [vmem:[%s2 + $0x8] sm:$0xf]
        %v295 = vld [vmem:[%s2 + $0xc] sm:$0xf]
        %v300 = vunpack.c.l.b16 %v292
        %v301 = vunpack.c.l.b16 %v293
        %v302 = vunpack.c.l.b16 %v294
        %v303 = vunpack.c.l.b16 %v295
        %v304 = vpack.c.b16 %v301, %v300
        %v305 = vpack.c.b16 %v303, %v302
        %vm308 = vcmask 261120
        %v310 = vsel %vm308, %v291, 0
        %312 = vmatprep.subr.bf16.mxu0 0
        %313 = vmatpush1.bf16.msra.mxu0 %v304
        %314 = vmatprep.subr.bf16.mxu0 0
        %315 = vmatpush1.bf16.msra.mxu0 %v305
        %316 = vmatprep.subr.bf16.mxu0 0
        %317 = vmatpush1.bf16.msra.mxu0 0
        %318 = vmatprep.subr.bf16.mxu0 0
        %319 = vmatpush1.bf16.msra.mxu0 0
        %320 = vmatprep.subr.bf16.mxu0 0
        %321 = vmatpush1.bf16.msra.mxu0 0
        %322 = vmatprep.subr.bf16.mxu0 0
        %323 = vmatpush1.bf16.msra.mxu0 0
        %324 = vmatprep.subr.bf16.mxu0 0
        %325 = vmatpush1.bf16.msra.mxu0 0
        %326 = vmatprep.subr.bf16.mxu0 0
        %327 = vmatpush1.bf16.msra.mxu0 0
        %328 = vmatprep.subr.bf16.mxu0 0
        %329 = vmatpush1.bf16.msra.mxu0 0
        %330 = vmatprep.subr.bf16.mxu0 0
        %331 = vmatpush1.bf16.msra.mxu0 0
        %332 = vmatprep.subr.bf16.mxu0 0
        %333 = vmatpush1.bf16.msra.mxu0 0
        %334 = vmatprep.subr.bf16.mxu0 0
        %335 = vmatpush1.bf16.msra.mxu0 0
        %336 = vmatprep.subr.bf16.mxu0 0
        %337 = vmatpush1.bf16.msra.mxu0 0
        %338 = vmatprep.subr.bf16.mxu0 0
        %339 = vmatpush1.bf16.msra.mxu0 0
        %340 = vmatprep.subr.bf16.mxu0 0
        %341 = vmatpush1.bf16.msra.mxu0 0
        %342 = vmatprep.subr.bf16.mxu0 0
        %343 = vmatpush1.bf16.msra.mxu0 0
        %344 = vmatprep.mubr.bf16.mxu0 0
        %345 = vmatmul.mubr.bf16.gmra.mrb[0].mxu0 %v310
        %v346 = vpop.f32.mrb[0].mxu0
        %v347 = vadd.f32 0.0, %v346
        %v348 = vpop.f32.mrb[0].mxu0
        %v349 = vpop.f32.mrb[0].mxu0
        %v350 = vadd.f32 0.0, %v349
        %v351 = vpop.f32.mrb[0].mxu0
        %352 = vdwg.mxu0
        %355 = vrot.lane.b32.xlu0 %v347, 96
        %v356 = vpop.permute.xlu0 %355
        %357 = vrot.lane.b32.xlu0 %v350, 96
        %v358 = vpop.permute.xlu0 %357
        %361 = vxpose.xlu0.b32.start [1/16] %v356, 128
        %362 = vxpose.xlu0.b32.cont [2/16] %v358, 128
        %363 = vxpose.xlu0.b32.cont [3/16] 0.0, 128
        %364 = vxpose.xlu0.b32.cont [4/16] 0.0, 128
        %365 = vxpose.xlu0.b32.cont [5/16] 0.0, 128
        %366 = vxpose.xlu0.b32.cont [6/16] 0.0, 128
        %367 = vxpose.xlu0.b32.cont [7/16] 0.0, 128
        %368 = vxpose.xlu0.b32.cont [8/16] 0.0, 128
        %369 = vxpose.xlu0.b32.cont [9/16] 0.0, 128
        %370 = vxpose.xlu0.b32.cont [10/16] 0.0, 128
        %371 = vxpose.xlu0.b32.cont [11/16] 0.0, 128
        %372 = vxpose.xlu0.b32.cont [12/16] 0.0, 128
        %373 = vxpose.xlu0.b32.cont [13/16] 0.0, 128
        %374 = vxpose.xlu0.b32.cont [14/16] 0.0, 128
        %375 = vxpose.xlu0.b32.cont [15/16] 0.0, 128
        %376 = vxpose.xlu0.b32.end [16/16] 0.0, 128
        %v377 = vpop.trf.xlu0
        %v378 = vpop.trf.xlu0
        %v379 = vpop.trf.xlu0
        %v380 = vpop.trf.xlu0
        %v381 = vpop.trf.xlu0
        %v382 = vpop.trf.xlu0
        %v383 = vpop.trf.xlu0
        %v384 = vpop.trf.xlu0
        %v385 = vpop.trf.xlu0
        %v386 = vpop.trf.xlu0
        %v387 = vpop.trf.xlu0
        %v388 = vpop.trf.xlu0
        %v389 = vpop.trf.xlu0
        %v390 = vpop.trf.xlu0
        %v391 = vpop.trf.xlu0
        %v392 = vpop.trf.xlu0
        %v393 = vpack.c.bf16 %v378, %v377
        %v394 = vpack.c.bf16 %v380, %v379
        %vm395 = vcmask 785920
        %v396 = vsel %vm395, %v347, 0.0
        %v397 = vsel %vm395, %v350, 0.0
        %v398 = vadd.f32 %v396, %v397
        %v399 = vrot.slane %v398, 4
        %v400 = vadd.f32 %v398, %v399
        %v401 = vrot.slane %v400, 2
        %v402 = vadd.f32 %v400, %v401
        %v403 = vrot.slane %v402, 1
        %v404 = vadd.f32 %v402, %v403
        %v405 = vrcp.pop 16.0
        %v406 = vmul.f32 %v404, %v405
        %v407 = vpack.c.bf16 %v350, %v347
        %vm408 = vcmask 64512
        %v410 = vsel %vm408, %v407, 0
        %vm412 = vcmask 1043456
        %v414 = vsel %vm412, %v393, 0
        %416 = vmatprep.subr.bf16.mxu0 0
        %417 = vmatpush1.bf16.msra.mxu0 %v414
        %418 = vmatprep.subr.bf16.mxu0 0
        %419 = vmatpush1.bf16.msra.mxu0 0
        %420 = vmatprep.subr.bf16.mxu0 0
        %421 = vmatpush1.bf16.msra.mxu0 0
        %422 = vmatprep.subr.bf16.mxu0 0
        %423 = vmatpush1.bf16.msra.mxu0 0
        %424 = vmatprep.subr.bf16.mxu0 0
        %425 = vmatpush1.bf16.msra.mxu0 0
        %426 = vmatprep.subr.bf16.mxu0 0
        %427 = vmatpush1.bf16.msra.mxu0 0
        %428 = vmatprep.subr.bf16.mxu0 0
        %429 = vmatpush1.bf16.msra.mxu0 0
        %430 = vmatprep.subr.bf16.mxu0 0
        %431 = vmatpush1.bf16.msra.mxu0 0
        %432 = vmatprep.subr.bf16.mxu0 0
        %433 = vmatpush1.bf16.msra.mxu0 0
        %434 = vmatprep.subr.bf16.mxu0 0
        %435 = vmatpush1.bf16.msra.mxu0 0
        %436 = vmatprep.subr.bf16.mxu0 0
        %437 = vmatpush1.bf16.msra.mxu0 0
        %438 = vmatprep.subr.bf16.mxu0 0
        %439 = vmatpush1.bf16.msra.mxu0 0
        %440 = vmatprep.subr.bf16.mxu0 0
        %441 = vmatpush1.bf16.msra.mxu0 0
        %442 = vmatprep.subr.bf16.mxu0 0
        %443 = vmatpush1.bf16.msra.mxu0 0
        %444 = vmatprep.subr.bf16.mxu0 0
        %445 = vmatpush1.bf16.msra.mxu0 0
        %446 = vmatprep.subr.bf16.mxu0 0
        %447 = vmatpush1.bf16.msra.mxu0 0
        %448 = vmatprep.mubr.bf16.mxu0 0
        %449 = vmatmul.mubr.bf16.gmra.mrb[0].mxu0 %v410
        %v450 = vpop.f32.mrb[0].mxu0
        %v451 = vadd.f32 0.0, %v450
        %v452 = vpop.f32.mrb[0].mxu0
        %v453 = vpop.f32.mrb[0].mxu0
        %v454 = vadd.f32 0.0, %v453
        %v455 = vpop.f32.mrb[0].mxu0
        %456 = vdwg.mxu0
        %v457 = vmul.f32 %v451, %v278
        %v458 = vmul.f32 %v454, %v279
        %vm459 = vcmask 130048
        %v460 = vsel %vm459, %v457, 0.0
        %461 = vadd.xlane.f32.xlu0 %v460
        %v462 = vpop.xlane.xlu0 %461
        %v463 = vsel %vm459, %v458, 0.0
        %464 = vadd.xlane.f32.xlu0 %v463
        %v465 = vpop.xlane.xlu0 %464
        %v466 = vsel %vm280, %v451, -inf
        %v467 = vsel %vm281, %v454, -inf
        %v468 = vsel %vm459, %v466, -inf
        %469 = vmax.xlane.f32.xlu0 %v468
        %v470 = vpop.xlane.xlu0 %469
        %v471 = vsel %vm459, %v467, -inf
        %472 = vmax.xlane.f32.xlu0 %v471
        %v473 = vpop.xlane.xlu0 %472
        %v474 = vmul.f32 %v462, 0.0625
        %v475 = vmul.f32 %v465, 0.0625
        %v476 = vsub.f32 %v470, %v474
        %v477 = vsub.f32 %v473, %v475
        %478 = vxpose.xlu0.b32.start [1/16] %v476, 128
        %479 = vxpose.xlu0.b32.cont [2/16] %v477, 128
        %480 = vxpose.xlu0.b32.cont [3/16] 0.0, 128
        %481 = vxpose.xlu0.b32.cont [4/16] 0.0, 128
        %482 = vxpose.xlu0.b32.cont [5/16] 0.0, 128
        %483 = vxpose.xlu0.b32.cont [6/16] 0.0, 128
        %484 = vxpose.xlu0.b32.cont [7/16] 0.0, 128
        %485 = vxpose.xlu0.b32.cont [8/16] 0.0, 128
        %486 = vxpose.xlu0.b32.cont [9/16] 0.0, 128
        %487 = vxpose.xlu0.b32.cont [10/16] 0.0, 128
        %488 = vxpose.xlu0.b32.cont [11/16] 0.0, 128
        %489 = vxpose.xlu0.b32.cont [12/16] 0.0, 128
        %490 = vxpose.xlu0.b32.cont [13/16] 0.0, 128
        %491 = vxpose.xlu0.b32.cont [14/16] 0.0, 128
        %492 = vxpose.xlu0.b32.cont [15/16] 0.0, 128
        %493 = vxpose.xlu0.b32.end [16/16] 0.0, 128
        %v494 = vpop.trf.xlu0
        %v495 = vpop.trf.xlu0
        %v496 = vpop.trf.xlu0
        %v497 = vpop.trf.xlu0
        %v498 = vpop.trf.xlu0
        %v499 = vpop.trf.xlu0
        %v500 = vpop.trf.xlu0
        %v501 = vpop.trf.xlu0
        %v502 = vpop.trf.xlu0
        %v503 = vpop.trf.xlu0
        %v504 = vpop.trf.xlu0
        %v505 = vpop.trf.xlu0
        %v506 = vpop.trf.xlu0
        %v507 = vpop.trf.xlu0
        %v508 = vpop.trf.xlu0
        %v509 = vpop.trf.xlu0
        %vm510 = vcmp.gt.f32.partialorder %v494, %v476
        %vm511 = vcmp.gt.f32.partialorder %v495, %v477
        %vm512 = vcmp.eq.f32.partialorder %v494, %v476
        %vm513 = vcmp.eq.f32.partialorder %v495, %v477
        %vm514 = vmand %vm512, %vm287
        %vm515 = vmand %vm513, %vm288
        %vm516 = vmor %vm510, %vm514
        %vm517 = vmor %vm511, %vm515
        %v518 = vsel %vm516, 1.0, 0.0
        %v519 = vsel %vm517, 1.0, 0.0
        %v520 = vsel %vm459, %v518, 0.0
        %521 = vadd.xlane.f32.xlu0 %v520
        %v522 = vpop.xlane.xlu0 %521
        %v523 = vsel %vm459, %v519, 0.0
        %524 = vadd.xlane.f32.xlu0 %v523
        %v525 = vpop.xlane.xlu0 %524
        %vm526 = vcmp.lt.f32.partialorder %v522, 6.0
        %vm527 = vcmp.lt.f32.partialorder %v525, 6.0
        %v528 = vsel %vm459, %v451, -inf
        %529 = vmax.xlane.f32.xlu0 %v528
        %v530 = vpop.xlane.xlu0 %529
        %v531 = vsel %vm459, %v454, -inf
        %532 = vmax.xlane.f32.xlu0 %v531
        %v533 = vpop.xlane.xlu0 %532
        %v534 = vsub.f32 %v451, %v530
        %v535 = vsub.f32 %v454, %v533
        %v536 = vmul.f32 %v534, 1.442695
        %v537 = vpow.pop %v536
        %v538 = vmul.f32 %v535, 1.442695
        %v539 = vpow.pop %v538
        %v540 = vsel %vm459, %v537, 0.0
        %541 = vadd.xlane.f32.xlu0 %v540
        %v542 = vpop.xlane.xlu0 %541
        %v543 = vsel %vm459, %v539, 0.0
        %544 = vadd.xlane.f32.xlu0 %v543
        %v545 = vpop.xlane.xlu0 %544
        %v546 = vrcp.pop %v542
        %v547 = vrcp.pop %v545
        %v548 = vmul.f32 %v537, %v546
        %v549 = vmul.f32 %v539, %v547
        %v550 = vpack.c.bf16 %v549, %v548
        %552 = vrot.lane.b32.xlu0 %v407, 64
        %v553 = vpop.permute.xlu0 %552
        %v556 = vsel %vm459, %v550, 0
        %558 = vmatprep.subr.bf16.mxu0 0
        %559 = vmatpush1.bf16.msra.mxu0 %v553
        %560 = vmatprep.subr.bf16.mxu0 0
        %561 = vmatpush1.bf16.msra.mxu0 0
        %562 = vmatprep.subr.bf16.mxu0 0
        %563 = vmatpush1.bf16.msra.mxu0 0
        %564 = vmatprep.subr.bf16.mxu0 0
        %565 = vmatpush1.bf16.msra.mxu0 0
        %566 = vmatprep.subr.bf16.mxu0 0
        %567 = vmatpush1.bf16.msra.mxu0 0
        %568 = vmatprep.subr.bf16.mxu0 0
        %569 = vmatpush1.bf16.msra.mxu0 0
        %570 = vmatprep.subr.bf16.mxu0 0
        %571 = vmatpush1.bf16.msra.mxu0 0
        %572 = vmatprep.subr.bf16.mxu0 0
        %573 = vmatpush1.bf16.msra.mxu0 0
        %574 = vmatprep.subr.bf16.mxu0 0
        %575 = vmatpush1.bf16.msra.mxu0 0
        %576 = vmatprep.subr.bf16.mxu0 0
        %577 = vmatpush1.bf16.msra.mxu0 0
        %578 = vmatprep.subr.bf16.mxu0 0
        %579 = vmatpush1.bf16.msra.mxu0 0
        %580 = vmatprep.subr.bf16.mxu0 0
        %581 = vmatpush1.bf16.msra.mxu0 0
        %582 = vmatprep.subr.bf16.mxu0 0
        %583 = vmatpush1.bf16.msra.mxu0 0
        %584 = vmatprep.subr.bf16.mxu0 0
        %585 = vmatpush1.bf16.msra.mxu0 0
        %586 = vmatprep.subr.bf16.mxu0 0
        %587 = vmatpush1.bf16.msra.mxu0 0
        %588 = vmatprep.subr.bf16.mxu0 0
        %589 = vmatpush1.bf16.msra.mxu0 0
        %590 = vmatprep.mubr.bf16.mxu0 0
        %591 = vmatmul.mubr.bf16.gmra.mrb[0].mxu0 %v556
        %v592 = vpop.f32.mrb[0].mxu0
        %v593 = vadd.f32 0.0, %v592
        %v594 = vpop.f32.mrb[0].mxu0
        %v595 = vpop.f32.mrb[0].mxu0
        %v596 = vadd.f32 0.0, %v595
        %v597 = vpop.f32.mrb[0].mxu0
        %598 = vdwg.mxu0
        %v599 = vsel %vm526, 1, 0
        %v600 = vsel %vm527, 1, 0
        %vm601 = vcmp.eq.s32.totalorder %v599, 1
        %vm602 = vcmp.eq.s32.totalorder %v600, 1
        %604 = vrot.lane.b32.xlu0 %v406, 64
        %v605 = vpop.permute.xlu0 %604
        %v607 = vsel %vm601, %v593, %v605
        %v608 = vsel %vm602, %v596, %v605
        %609 = vrot.lane.b32.xlu0 %v407, 120
        %v610 = vpop.permute.xlu0 %609
        %v612 = vrot.slane %v393, 4
        %v614 = vsel %vm408, %v610, 0
        %v617 = vsel %vm412, %v612, 0
        %619 = vmatprep.subr.bf16.mxu0 0
        %620 = vmatpush1.bf16.msra.mxu0 %v617
        %621 = vmatprep.subr.bf16.mxu0 0
        %622 = vmatpush1.bf16.msra.mxu0 0
        %623 = vmatprep.subr.bf16.mxu0 0
        %624 = vmatpush1.bf16.msra.mxu0 0
        %625 = vmatprep.subr.bf16.mxu0 0
        %626 = vmatpush1.bf16.msra.mxu0 0
        %627 = vmatprep.subr.bf16.mxu0 0
        %628 = vmatpush1.bf16.msra.mxu0 0
        %629 = vmatprep.subr.bf16.mxu0 0
        %630 = vmatpush1.bf16.msra.mxu0 0
        %631 = vmatprep.subr.bf16.mxu0 0
        %632 = vmatpush1.bf16.msra.mxu0 0
        %633 = vmatprep.subr.bf16.mxu0 0
        %634 = vmatpush1.bf16.msra.mxu0 0
        %635 = vmatprep.subr.bf16.mxu0 0
        %636 = vmatpush1.bf16.msra.mxu0 0
        %637 = vmatprep.subr.bf16.mxu0 0
        %638 = vmatpush1.bf16.msra.mxu0 0
        %639 = vmatprep.subr.bf16.mxu0 0
        %640 = vmatpush1.bf16.msra.mxu0 0
        %641 = vmatprep.subr.bf16.mxu0 0
        %642 = vmatpush1.bf16.msra.mxu0 0
        %643 = vmatprep.subr.bf16.mxu0 0
        %644 = vmatpush1.bf16.msra.mxu0 0
        %645 = vmatprep.subr.bf16.mxu0 0
        %646 = vmatpush1.bf16.msra.mxu0 0
        %647 = vmatprep.subr.bf16.mxu0 0
        %648 = vmatpush1.bf16.msra.mxu0 0
        %649 = vmatprep.subr.bf16.mxu0 0
        %650 = vmatpush1.bf16.msra.mxu0 0
        %651 = vmatprep.mubr.bf16.mxu0 0
        %652 = vmatmul.mubr.bf16.gmra.mrb[0].mxu0 %v614
        %v653 = vpop.f32.mrb[0].mxu0
        %v654 = vadd.f32 0.0, %v653
        %v655 = vpop.f32.mrb[0].mxu0
        %v656 = vpop.f32.mrb[0].mxu0
        %v657 = vadd.f32 0.0, %v656
        %v658 = vpop.f32.mrb[0].mxu0
        %659 = vdwg.mxu0
        %v660 = vmul.f32 %v654, %v278
        %v661 = vmul.f32 %v657, %v279
        %v662 = vsel %vm459, %v660, 0.0
        %663 = vadd.xlane.f32.xlu0 %v662
        %v664 = vpop.xlane.xlu0 %663
        %v665 = vsel %vm459, %v661, 0.0
        %666 = vadd.xlane.f32.xlu0 %v665
        %v667 = vpop.xlane.xlu0 %666
        %v668 = vsel %vm280, %v654, -inf
        %v669 = vsel %vm281, %v657, -inf
        %v670 = vsel %vm459, %v668, -inf
        %671 = vmax.xlane.f32.xlu0 %v670
        %v672 = vpop.xlane.xlu0 %671
        %v673 = vsel %vm459, %v669, -inf
        %674 = vmax.xlane.f32.xlu0 %v673
        %v675 = vpop.xlane.xlu0 %674
        %v676 = vmul.f32 %v664, 0.0625
        %v677 = vmul.f32 %v667, 0.0625
        %v678 = vsub.f32 %v672, %v676
        %v679 = vsub.f32 %v675, %v677
        %680 = vxpose.xlu0.b32.start [1/16] %v678, 128
        %681 = vxpose.xlu0.b32.cont [2/16] %v679, 128
        %682 = vxpose.xlu0.b32.cont [3/16] 0.0, 128
        %683 = vxpose.xlu0.b32.cont [4/16] 0.0, 128
        %684 = vxpose.xlu0.b32.cont [5/16] 0.0, 128
        %685 = vxpose.xlu0.b32.cont [6/16] 0.0, 128
        %686 = vxpose.xlu0.b32.cont [7/16] 0.0, 128
        %687 = vxpose.xlu0.b32.cont [8/16] 0.0, 128
        %688 = vxpose.xlu0.b32.cont [9/16] 0.0, 128
        %689 = vxpose.xlu0.b32.cont [10/16] 0.0, 128
        %690 = vxpose.xlu0.b32.cont [11/16] 0.0, 128
        %691 = vxpose.xlu0.b32.cont [12/16] 0.0, 128
        %692 = vxpose.xlu0.b32.cont [13/16] 0.0, 128
        %693 = vxpose.xlu0.b32.cont [14/16] 0.0, 128
        %694 = vxpose.xlu0.b32.cont [15/16] 0.0, 128
        %695 = vxpose.xlu0.b32.end [16/16] 0.0, 128
        %v696 = vpop.trf.xlu0
        %v697 = vpop.trf.xlu0
        %v698 = vpop.trf.xlu0
        %v699 = vpop.trf.xlu0
        %v700 = vpop.trf.xlu0
        %v701 = vpop.trf.xlu0
        %v702 = vpop.trf.xlu0
        %v703 = vpop.trf.xlu0
        %v704 = vpop.trf.xlu0
        %v705 = vpop.trf.xlu0
        %v706 = vpop.trf.xlu0
        %v707 = vpop.trf.xlu0
        %v708 = vpop.trf.xlu0
        %v709 = vpop.trf.xlu0
        %v710 = vpop.trf.xlu0
        %v711 = vpop.trf.xlu0
        %vm712 = vcmp.gt.f32.partialorder %v696, %v678
        %vm713 = vcmp.gt.f32.partialorder %v697, %v679
        %vm714 = vcmp.eq.f32.partialorder %v696, %v678
        %vm715 = vcmp.eq.f32.partialorder %v697, %v679
        %vm716 = vmand %vm714, %vm287
        %vm717 = vmand %vm715, %vm288
        %vm718 = vmor %vm712, %vm716
        %vm719 = vmor %vm713, %vm717
        %v720 = vsel %vm718, 1.0, 0.0
        %v721 = vsel %vm719, 1.0, 0.0
        %v722 = vsel %vm459, %v720, 0.0
        %723 = vadd.xlane.f32.xlu0 %v722
        %v724 = vpop.xlane.xlu0 %723
        %v725 = vsel %vm459, %v721, 0.0
        %726 = vadd.xlane.f32.xlu0 %v725
        %v727 = vpop.xlane.xlu0 %726
        %vm728 = vcmp.lt.f32.partialorder %v724, 6.0
        %vm729 = vcmp.lt.f32.partialorder %v727, 6.0
        %v730 = vsel %vm459, %v654, -inf
        %731 = vmax.xlane.f32.xlu0 %v730
        %v732 = vpop.xlane.xlu0 %731
        %v733 = vsel %vm459, %v657, -inf
        %734 = vmax.xlane.f32.xlu0 %v733
        %v735 = vpop.xlane.xlu0 %734
        %v736 = vsub.f32 %v654, %v732
        %v737 = vsub.f32 %v657, %v735
        %v738 = vmul.f32 %v736, 1.442695
        %v739 = vpow.pop %v738
        %v740 = vmul.f32 %v737, 1.442695
        %v741 = vpow.pop %v740
        %v742 = vsel %vm459, %v739, 0.0
        %743 = vadd.xlane.f32.xlu0 %v742
        %v744 = vpop.xlane.xlu0 %743
        %v745 = vsel %vm459, %v741, 0.0
        %746 = vadd.xlane.f32.xlu0 %v745
        %v747 = vpop.xlane.xlu0 %746
        %v748 = vrcp.pop %v744
        %v749 = vrcp.pop %v747
        %v750 = vmul.f32 %v739, %v748
        %v751 = vmul.f32 %v741, %v749
        %v752 = vpack.c.bf16 %v751, %v750
        %753 = vrot.lane.b32.xlu0 %v407, 56
        %v754 = vpop.permute.xlu0 %753
        %v757 = vsel %vm459, %v752, 0
        %759 = vmatprep.subr.bf16.mxu0 0
        %760 = vmatpush1.bf16.msra.mxu0 %v754
        %761 = vmatprep.subr.bf16.mxu0 0
        %762 = vmatpush1.bf16.msra.mxu0 0
        %763 = vmatprep.subr.bf16.mxu0 0
        %764 = vmatpush1.bf16.msra.mxu0 0
        %765 = vmatprep.subr.bf16.mxu0 0
        %766 = vmatpush1.bf16.msra.mxu0 0
        %767 = vmatprep.subr.bf16.mxu0 0
        %768 = vmatpush1.bf16.msra.mxu0 0
        %769 = vmatprep.subr.bf16.mxu0 0
        %770 = vmatpush1.bf16.msra.mxu0 0
        %771 = vmatprep.subr.bf16.mxu0 0
        %772 = vmatpush1.bf16.msra.mxu0 0
        %773 = vmatprep.subr.bf16.mxu0 0
        %774 = vmatpush1.bf16.msra.mxu0 0
        %775 = vmatprep.subr.bf16.mxu0 0
        %776 = vmatpush1.bf16.msra.mxu0 0
        %777 = vmatprep.subr.bf16.mxu0 0
        %778 = vmatpush1.bf16.msra.mxu0 0
        %779 = vmatprep.subr.bf16.mxu0 0
        %780 = vmatpush1.bf16.msra.mxu0 0
        %781 = vmatprep.subr.bf16.mxu0 0
        %782 = vmatpush1.bf16.msra.mxu0 0
        %783 = vmatprep.subr.bf16.mxu0 0
        %784 = vmatpush1.bf16.msra.mxu0 0
        %785 = vmatprep.subr.bf16.mxu0 0
        %786 = vmatpush1.bf16.msra.mxu0 0
        %787 = vmatprep.subr.bf16.mxu0 0
        %788 = vmatpush1.bf16.msra.mxu0 0
        %789 = vmatprep.subr.bf16.mxu0 0
        %790 = vmatpush1.bf16.msra.mxu0 0
        %791 = vmatprep.mubr.bf16.mxu0 0
        %792 = vmatmul.mubr.bf16.gmra.mrb[0].mxu0 %v757
        %v793 = vpop.f32.mrb[0].mxu0
        %v794 = vadd.f32 0.0, %v793
        %v795 = vpop.f32.mrb[0].mxu0
        %v796 = vpop.f32.mrb[0].mxu0
        %v797 = vadd.f32 0.0, %v796
        %v798 = vpop.f32.mrb[0].mxu0
        %799 = vdwg.mxu0
        %v800 = vsel %vm728, 1, 0
        %v801 = vsel %vm729, 1, 0
        %vm802 = vcmp.eq.s32.totalorder %v800, 1
        %vm803 = vcmp.eq.s32.totalorder %v801, 1
        %804 = vrot.lane.b32.xlu0 %v406, 56
        %v805 = vpop.permute.xlu0 %804
        %v807 = vsel %vm802, %v794, %v805
        %v808 = vsel %vm803, %v797, %v805
        %809 = vrot.lane.b32.xlu0 %v407, 112
        %v810 = vpop.permute.xlu0 %809
        %v812 = vsel %vm408, %v810, 0
        %v815 = vsel %vm412, %v394, 0
        %817 = vmatprep.subr.bf16.mxu0 0
        %818 = vmatpush1.bf16.msra.mxu0 %v815
        %819 = vmatprep.subr.bf16.mxu0 0
        %820 = vmatpush1.bf16.msra.mxu0 0
        %821 = vmatprep.subr.bf16.mxu0 0
        %822 = vmatpush1.bf16.msra.mxu0 0
        %823 = vmatprep.subr.bf16.mxu0 0
        %824 = vmatpush1.bf16.msra.mxu0 0
        %825 = vmatprep.subr.bf16.mxu0 0
        %826 = vmatpush1.bf16.msra.mxu0 0
        %827 = vmatprep.subr.bf16.mxu0 0
        %828 = vmatpush1.bf16.msra.mxu0 0
        %829 = vmatprep.subr.bf16.mxu0 0
        %830 = vmatpush1.bf16.msra.mxu0 0
        %831 = vmatprep.subr.bf16.mxu0 0
        %832 = vmatpush1.bf16.msra.mxu0 0
        %833 = vmatprep.subr.bf16.mxu0 0
        %834 = vmatpush1.bf16.msra.mxu0 0
        %835 = vmatprep.subr.bf16.mxu0 0
        %836 = vmatpush1.bf16.msra.mxu0 0
        %837 = vmatprep.subr.bf16.mxu0 0
        %838 = vmatpush1.bf16.msra.mxu0 0
        %839 = vmatprep.subr.bf16.mxu0 0
        %840 = vmatpush1.bf16.msra.mxu0 0
        %841 = vmatprep.subr.bf16.mxu0 0
        %842 = vmatpush1.bf16.msra.mxu0 0
        %843 = vmatprep.subr.bf16.mxu0 0
        %844 = vmatpush1.bf16.msra.mxu0 0
        %845 = vmatprep.subr.bf16.mxu0 0
        %846 = vmatpush1.bf16.msra.mxu0 0
        %847 = vmatprep.subr.bf16.mxu0 0
        %848 = vmatpush1.bf16.msra.mxu0 0
        %849 = vmatprep.mubr.bf16.mxu0 0
        %850 = vmatmul.mubr.bf16.gmra.mrb[0].mxu0 %v812
        %v851 = vpop.f32.mrb[0].mxu0
        %v852 = vadd.f32 0.0, %v851
        %v853 = vpop.f32.mrb[0].mxu0
        %v854 = vpop.f32.mrb[0].mxu0
        %v855 = vadd.f32 0.0, %v854
        %v856 = vpop.f32.mrb[0].mxu0
        %857 = vdwg.mxu0
        %v858 = vmul.f32 %v852, %v278
        %v859 = vmul.f32 %v855, %v279
        %v860 = vsel %vm459, %v858, 0.0
        %861 = vadd.xlane.f32.xlu0 %v860
        %v862 = vpop.xlane.xlu0 %861
        %v863 = vsel %vm459, %v859, 0.0
        %864 = vadd.xlane.f32.xlu0 %v863
        %v865 = vpop.xlane.xlu0 %864
        %v866 = vsel %vm280, %v852, -inf
        %v867 = vsel %vm281, %v855, -inf
        %v868 = vsel %vm459, %v866, -inf
        %869 = vmax.xlane.f32.xlu0 %v868
        %v870 = vpop.xlane.xlu0 %869
        %v871 = vsel %vm459, %v867, -inf
        %872 = vmax.xlane.f32.xlu0 %v871
        %v873 = vpop.xlane.xlu0 %872
        %v874 = vmul.f32 %v862, 0.0625
        %v875 = vmul.f32 %v865, 0.0625
        %v876 = vsub.f32 %v870, %v874
        %v877 = vsub.f32 %v873, %v875
        %878 = vxpose.xlu0.b32.start [1/16] %v876, 128
        %879 = vxpose.xlu0.b32.cont [2/16] %v877, 128
        %880 = vxpose.xlu0.b32.cont [3/16] 0.0, 128
        %881 = vxpose.xlu0.b32.cont [4/16] 0.0, 128
        %882 = vxpose.xlu0.b32.cont [5/16] 0.0, 128
        %883 = vxpose.xlu0.b32.cont [6/16] 0.0, 128
        %884 = vxpose.xlu0.b32.cont [7/16] 0.0, 128
        %885 = vxpose.xlu0.b32.cont [8/16] 0.0, 128
        %886 = vxpose.xlu0.b32.cont [9/16] 0.0, 128
        %887 = vxpose.xlu0.b32.cont [10/16] 0.0, 128
        %888 = vxpose.xlu0.b32.cont [11/16] 0.0, 128
        %889 = vxpose.xlu0.b32.cont [12/16] 0.0, 128
        %890 = vxpose.xlu0.b32.cont [13/16] 0.0, 128
        %891 = vxpose.xlu0.b32.cont [14/16] 0.0, 128
        %892 = vxpose.xlu0.b32.cont [15/16] 0.0, 128
        %893 = vxpose.xlu0.b32.end [16/16] 0.0, 128
        %v894 = vpop.trf.xlu0
        %v895 = vpop.trf.xlu0
        %v896 = vpop.trf.xlu0
        %v897 = vpop.trf.xlu0
        %v898 = vpop.trf.xlu0
        %v899 = vpop.trf.xlu0
        %v900 = vpop.trf.xlu0
        %v901 = vpop.trf.xlu0
        %v902 = vpop.trf.xlu0
        %v903 = vpop.trf.xlu0
        %v904 = vpop.trf.xlu0
        %v905 = vpop.trf.xlu0
        %v906 = vpop.trf.xlu0
        %v907 = vpop.trf.xlu0
        %v908 = vpop.trf.xlu0
        %v909 = vpop.trf.xlu0
        %vm910 = vcmp.gt.f32.partialorder %v894, %v876
        %vm911 = vcmp.gt.f32.partialorder %v895, %v877
        %vm912 = vcmp.eq.f32.partialorder %v894, %v876
        %vm913 = vcmp.eq.f32.partialorder %v895, %v877
        %vm914 = vmand %vm912, %vm287
        %vm915 = vmand %vm913, %vm288
        %vm916 = vmor %vm910, %vm914
        %vm917 = vmor %vm911, %vm915
        %v918 = vsel %vm916, 1.0, 0.0
        %v919 = vsel %vm917, 1.0, 0.0
        %v920 = vsel %vm459, %v918, 0.0
        %921 = vadd.xlane.f32.xlu0 %v920
        %v922 = vpop.xlane.xlu0 %921
        %v923 = vsel %vm459, %v919, 0.0
        %924 = vadd.xlane.f32.xlu0 %v923
        %v925 = vpop.xlane.xlu0 %924
        %vm926 = vcmp.lt.f32.partialorder %v922, 6.0
        %vm927 = vcmp.lt.f32.partialorder %v925, 6.0
        %v928 = vsel %vm459, %v852, -inf
        %929 = vmax.xlane.f32.xlu0 %v928
        %v930 = vpop.xlane.xlu0 %929
        %v931 = vsel %vm459, %v855, -inf
        %932 = vmax.xlane.f32.xlu0 %v931
        %v933 = vpop.xlane.xlu0 %932
        %v934 = vsub.f32 %v852, %v930
        %v935 = vsub.f32 %v855, %v933
        %v936 = vmul.f32 %v934, 1.442695
        %v937 = vpow.pop %v936
        %v938 = vmul.f32 %v935, 1.442695
        %v939 = vpow.pop %v938
        %v940 = vsel %vm459, %v937, 0.0
        %941 = vadd.xlane.f32.xlu0 %v940
        %v942 = vpop.xlane.xlu0 %941
        %v943 = vsel %vm459, %v939, 0.0
        %944 = vadd.xlane.f32.xlu0 %v943
        %v945 = vpop.xlane.xlu0 %944
        %v946 = vrcp.pop %v942
        %v947 = vrcp.pop %v945
        %v948 = vmul.f32 %v937, %v946
        %v949 = vmul.f32 %v939, %v947
        %v950 = vpack.c.bf16 %v949, %v948
        %951 = vrot.lane.b32.xlu0 %v407, 48
        %v952 = vpop.permute.xlu0 %951
        %v955 = vsel %vm459, %v950, 0
        %957 = vmatprep.subr.bf16.mxu0 0
        %958 = vmatpush1.bf16.msra.mxu0 %v952
        %959 = vmatprep.subr.bf16.mxu0 0
        %960 = vmatpush1.bf16.msra.mxu0 0
        %961 = vmatprep.subr.bf16.mxu0 0
        %962 = vmatpush1.bf16.msra.mxu0 0
        %963 = vmatprep.subr.bf16.mxu0 0
        %964 = vmatpush1.bf16.msra.mxu0 0
        %965 = vmatprep.subr.bf16.mxu0 0
        %966 = vmatpush1.bf16.msra.mxu0 0
        %967 = vmatprep.subr.bf16.mxu0 0
        %968 = vmatpush1.bf16.msra.mxu0 0
        %969 = vmatprep.subr.bf16.mxu0 0
        %970 = vmatpush1.bf16.msra.mxu0 0
        %971 = vmatprep.subr.bf16.mxu0 0
        %972 = vmatpush1.bf16.msra.mxu0 0
        %973 = vmatprep.subr.bf16.mxu0 0
        %974 = vmatpush1.bf16.msra.mxu0 0
        %975 = vmatprep.subr.bf16.mxu0 0
        %976 = vmatpush1.bf16.msra.mxu0 0
        %977 = vmatprep.subr.bf16.mxu0 0
        %978 = vmatpush1.bf16.msra.mxu0 0
        %979 = vmatprep.subr.bf16.mxu0 0
        %980 = vmatpush1.bf16.msra.mxu0 0
        %981 = vmatprep.subr.bf16.mxu0 0
        %982 = vmatpush1.bf16.msra.mxu0 0
        %983 = vmatprep.subr.bf16.mxu0 0
        %984 = vmatpush1.bf16.msra.mxu0 0
        %985 = vmatprep.subr.bf16.mxu0 0
        %986 = vmatpush1.bf16.msra.mxu0 0
        %987 = vmatprep.subr.bf16.mxu0 0
        %988 = vmatpush1.bf16.msra.mxu0 0
        %989 = vmatprep.mubr.bf16.mxu0 0
        %990 = vmatmul.mubr.bf16.gmra.mrb[0].mxu0 %v955
        %v991 = vpop.f32.mrb[0].mxu0
        %v992 = vadd.f32 0.0, %v991
        %v993 = vpop.f32.mrb[0].mxu0
        %v994 = vpop.f32.mrb[0].mxu0
        %v995 = vadd.f32 0.0, %v994
        %v996 = vpop.f32.mrb[0].mxu0
        %997 = vdwg.mxu0
        %v998 = vsel %vm926, 1, 0
        %v999 = vsel %vm927, 1, 0
        %vm1000 = vcmp.eq.s32.totalorder %v998, 1
        %vm1001 = vcmp.eq.s32.totalorder %v999, 1
        %1002 = vrot.lane.b32.xlu0 %v406, 48
        %v1003 = vpop.permute.xlu0 %1002
        %v1005 = vsel %vm1000, %v992, %v1003
        %v1006 = vsel %vm1001, %v995, %v1003
        %1007 = vrot.lane.b32.xlu0 %v407, 104
        %v1008 = vpop.permute.xlu0 %1007
        %v1010 = vrot.slane %v394, 4
        %v1012 = vsel %vm408, %v1008, 0
        %v1015 = vsel %vm412, %v1010, 0
        %1017 = vmatprep.subr.bf16.mxu0 0
        %1018 = vmatpush1.bf16.msra.mxu0 %v1015
        %1019 = vmatprep.subr.bf16.mxu0 0
        %1020 = vmatpush1.bf16.msra.mxu0 0
        %1021 = vmatprep.subr.bf16.mxu0 0
        %1022 = vmatpush1.bf16.msra.mxu0 0
        %1023 = vmatprep.subr.bf16.mxu0 0
        %1024 = vmatpush1.bf16.msra.mxu0 0
        %1025 = vmatprep.subr.bf16.mxu0 0
        %1026 = vmatpush1.bf16.msra.mxu0 0
        %1027 = vmatprep.subr.bf16.mxu0 0
        %1028 = vmatpush1.bf16.msra.mxu0 0
        %1029 = vmatprep.subr.bf16.mxu0 0
        %1030 = vmatpush1.bf16.msra.mxu0 0
        %1031 = vmatprep.subr.bf16.mxu0 0
        %1032 = vmatpush1.bf16.msra.mxu0 0
        %1033 = vmatprep.subr.bf16.mxu0 0
        %1034 = vmatpush1.bf16.msra.mxu0 0
        %1035 = vmatprep.subr.bf16.mxu0 0
        %1036 = vmatpush1.bf16.msra.mxu0 0
        %1037 = vmatprep.subr.bf16.mxu0 0
        %1038 = vmatpush1.bf16.msra.mxu0 0
        %1039 = vmatprep.subr.bf16.mxu0 0
        %1040 = vmatpush1.bf16.msra.mxu0 0
        %1041 = vmatprep.subr.bf16.mxu0 0
        %1042 = vmatpush1.bf16.msra.mxu0 0
        %1043 = vmatprep.subr.bf16.mxu0 0
        %1044 = vmatpush1.bf16.msra.mxu0 0
        %1045 = vmatprep.subr.bf16.mxu0 0
        %1046 = vmatpush1.bf16.msra.mxu0 0
        %1047 = vmatprep.subr.bf16.mxu0 0
        %1048 = vmatpush1.bf16.msra.mxu0 0
        %1049 = vmatprep.mubr.bf16.mxu0 0
        %1050 = vmatmul.mubr.bf16.gmra.mrb[0].mxu0 %v1012
        %v1051 = vpop.f32.mrb[0].mxu0
        %v1052 = vadd.f32 0.0, %v1051
        %v1053 = vpop.f32.mrb[0].mxu0
        %v1054 = vpop.f32.mrb[0].mxu0
        %v1055 = vadd.f32 0.0, %v1054
        %v1056 = vpop.f32.mrb[0].mxu0
        %1057 = vdwg.mxu0
        %v1058 = vmul.f32 %v1052, %v278
        %v1059 = vmul.f32 %v1055, %v279
        %v1060 = vsel %vm459, %v1058, 0.0
        %1061 = vadd.xlane.f32.xlu0 %v1060
        %v1062 = vpop.xlane.xlu0 %1061
        %v1063 = vsel %vm459, %v1059, 0.0
        %1064 = vadd.xlane.f32.xlu0 %v1063
        %v1065 = vpop.xlane.xlu0 %1064
        %v1066 = vsel %vm280, %v1052, -inf
        %v1067 = vsel %vm281, %v1055, -inf
        %v1068 = vsel %vm459, %v1066, -inf
        %1069 = vmax.xlane.f32.xlu0 %v1068
        %v1070 = vpop.xlane.xlu0 %1069
        %v1071 = vsel %vm459, %v1067, -inf
        %1072 = vmax.xlane.f32.xlu0 %v1071
        %v1073 = vpop.xlane.xlu0 %1072
        %v1074 = vmul.f32 %v1062, 0.0625
        %v1075 = vmul.f32 %v1065, 0.0625
        %v1076 = vsub.f32 %v1070, %v1074
        %v1077 = vsub.f32 %v1073, %v1075
        %1078 = vxpose.xlu0.b32.start [1/16] %v1076, 128
        %1079 = vxpose.xlu0.b32.cont [2/16] %v1077, 128
        %1080 = vxpose.xlu0.b32.cont [3/16] 0.0, 128
        %1081 = vxpose.xlu0.b32.cont [4/16] 0.0, 128
        %1082 = vxpose.xlu0.b32.cont [5/16] 0.0, 128
        %1083 = vxpose.xlu0.b32.cont [6/16] 0.0, 128
        %1084 = vxpose.xlu0.b32.cont [7/16] 0.0, 128
        %1085 = vxpose.xlu0.b32.cont [8/16] 0.0, 128
        %1086 = vxpose.xlu0.b32.cont [9/16] 0.0, 128
        %1087 = vxpose.xlu0.b32.cont [10/16] 0.0, 128
        %1088 = vxpose.xlu0.b32.cont [11/16] 0.0, 128
        %1089 = vxpose.xlu0.b32.cont [12/16] 0.0, 128
        %1090 = vxpose.xlu0.b32.cont [13/16] 0.0, 128
        %1091 = vxpose.xlu0.b32.cont [14/16] 0.0, 128
        %1092 = vxpose.xlu0.b32.cont [15/16] 0.0, 128
        %1093 = vxpose.xlu0.b32.end [16/16] 0.0, 128
        %v1094 = vpop.trf.xlu0
        %v1095 = vpop.trf.xlu0
        %v1096 = vpop.trf.xlu0
        %v1097 = vpop.trf.xlu0
        %v1098 = vpop.trf.xlu0
        %v1099 = vpop.trf.xlu0
        %v1100 = vpop.trf.xlu0
        %v1101 = vpop.trf.xlu0
        %v1102 = vpop.trf.xlu0
        %v1103 = vpop.trf.xlu0
        %v1104 = vpop.trf.xlu0
        %v1105 = vpop.trf.xlu0
        %v1106 = vpop.trf.xlu0
        %v1107 = vpop.trf.xlu0
        %v1108 = vpop.trf.xlu0
        %v1109 = vpop.trf.xlu0
        %vm1110 = vcmp.gt.f32.partialorder %v1094, %v1076
        %vm1111 = vcmp.gt.f32.partialorder %v1095, %v1077
        %vm1112 = vcmp.eq.f32.partialorder %v1094, %v1076
        %vm1113 = vcmp.eq.f32.partialorder %v1095, %v1077
        %vm1114 = vmand %vm1112, %vm287
        %vm1115 = vmand %vm1113, %vm288
        %vm1116 = vmor %vm1110, %vm1114
        %vm1117 = vmor %vm1111, %vm1115
        %v1118 = vsel %vm1116, 1.0, 0.0
        %v1119 = vsel %vm1117, 1.0, 0.0
        %v1120 = vsel %vm459, %v1118, 0.0
        %1121 = vadd.xlane.f32.xlu0 %v1120
        %v1122 = vpop.xlane.xlu0 %1121
        %v1123 = vsel %vm459, %v1119, 0.0
        %1124 = vadd.xlane.f32.xlu0 %v1123
        %v1125 = vpop.xlane.xlu0 %1124
        %vm1126 = vcmp.lt.f32.partialorder %v1122, 6.0
        %vm1127 = vcmp.lt.f32.partialorder %v1125, 6.0
        %v1128 = vsel %vm459, %v1052, -inf
        %1129 = vmax.xlane.f32.xlu0 %v1128
        %v1130 = vpop.xlane.xlu0 %1129
        %v1131 = vsel %vm459, %v1055, -inf
        %1132 = vmax.xlane.f32.xlu0 %v1131
        %v1133 = vpop.xlane.xlu0 %1132
        %v1134 = vsub.f32 %v1052, %v1130
        %v1135 = vsub.f32 %v1055, %v1133
        %v1136 = vmul.f32 %v1134, 1.442695
        %v1137 = vpow.pop %v1136
        %v1138 = vmul.f32 %v1135, 1.442695
        %v1139 = vpow.pop %v1138
        %v1140 = vsel %vm459, %v1137, 0.0
        %1141 = vadd.xlane.f32.xlu0 %v1140
        %v1142 = vpop.xlane.xlu0 %1141
        %v1143 = vsel %vm459, %v1139, 0.0
        %1144 = vadd.xlane.f32.xlu0 %v1143
        %v1145 = vpop.xlane.xlu0 %1144
        %v1146 = vrcp.pop %v1142
        %v1147 = vrcp.pop %v1145
        %v1148 = vmul.f32 %v1137, %v1146
        %v1149 = vmul.f32 %v1139, %v1147
        %v1150 = vpack.c.bf16 %v1149, %v1148
        %1151 = vrot.lane.b32.xlu0 %v407, 40
        %v1152 = vpop.permute.xlu0 %1151
        %v1155 = vsel %vm459, %v1150, 0
        %1157 = vmatprep.subr.bf16.mxu0 0
        %1158 = vmatpush1.bf16.msra.mxu0 %v1152
        %1159 = vmatprep.subr.bf16.mxu0 0
        %1160 = vmatpush1.bf16.msra.mxu0 0
        %1161 = vmatprep.subr.bf16.mxu0 0
        %1162 = vmatpush1.bf16.msra.mxu0 0
        %1163 = vmatprep.subr.bf16.mxu0 0
        %1164 = vmatpush1.bf16.msra.mxu0 0
        %1165 = vmatprep.subr.bf16.mxu0 0
        %1166 = vmatpush1.bf16.msra.mxu0 0
        %1167 = vmatprep.subr.bf16.mxu0 0
        %1168 = vmatpush1.bf16.msra.mxu0 0
        %1169 = vmatprep.subr.bf16.mxu0 0
        %1170 = vmatpush1.bf16.msra.mxu0 0
        %1171 = vmatprep.subr.bf16.mxu0 0
        %1172 = vmatpush1.bf16.msra.mxu0 0
        %1173 = vmatprep.subr.bf16.mxu0 0
        %1174 = vmatpush1.bf16.msra.mxu0 0
        %1175 = vmatprep.subr.bf16.mxu0 0
        %1176 = vmatpush1.bf16.msra.mxu0 0
        %1177 = vmatprep.subr.bf16.mxu0 0
        %1178 = vmatpush1.bf16.msra.mxu0 0
        %1179 = vmatprep.subr.bf16.mxu0 0
        %1180 = vmatpush1.bf16.msra.mxu0 0
        %1181 = vmatprep.subr.bf16.mxu0 0
        %1182 = vmatpush1.bf16.msra.mxu0 0
        %1183 = vmatprep.subr.bf16.mxu0 0
        %1184 = vmatpush1.bf16.msra.mxu0 0
        %1185 = vmatprep.subr.bf16.mxu0 0
        %1186 = vmatpush1.bf16.msra.mxu0 0
        %1187 = vmatprep.subr.bf16.mxu0 0
        %1188 = vmatpush1.bf16.msra.mxu0 0
        %1189 = vmatprep.mubr.bf16.mxu0 0
        %1190 = vmatmul.mubr.bf16.gmra.mrb[0].mxu0 %v1155
        %v1191 = vpop.f32.mrb[0].mxu0
        %v1192 = vadd.f32 0.0, %v1191
        %v1193 = vpop.f32.mrb[0].mxu0
        %v1194 = vpop.f32.mrb[0].mxu0
        %v1195 = vadd.f32 0.0, %v1194
        %v1196 = vpop.f32.mrb[0].mxu0
        %1197 = vdwg.mxu0
        %v1198 = vsel %vm1126, 1, 0
        %v1199 = vsel %vm1127, 1, 0
        %vm1200 = vcmp.eq.s32.totalorder %v1198, 1
        %vm1201 = vcmp.eq.s32.totalorder %v1199, 1
        %1202 = vrot.lane.b32.xlu0 %v406, 40
        %v1203 = vpop.permute.xlu0 %1202
        %v1205 = vsel %vm1200, %v1192, %v1203
        %v1206 = vsel %vm1201, %v1195, %v1203
        %1209 = vrot.lane.b32.xlu0 %v807, 8
        %v1210 = vpop.permute.xlu0 %1209
        %1211 = vrot.lane.b32.xlu0 %v808, 8
        %v1212 = vpop.permute.xlu0 %1211
        %1217 = vrot.lane.b32.xlu0 %v1005, 16
        %v1218 = vpop.permute.xlu0 %1217
        %1219 = vrot.lane.b32.xlu0 %v1006, 16
        %v1220 = vpop.permute.xlu0 %1219
        %1225 = vrot.lane.b32.xlu0 %v1205, 24
        %v1226 = vpop.permute.xlu0 %1225
        %1227 = vrot.lane.b32.xlu0 %v1206, 24
        %v1228 = vpop.permute.xlu0 %1227
        %v1231 = vsel %vm408, %v607, %v1210
        %v1232 = vsel %vm408, %v608, %v1212
        %v1233 = vsel %vm459, %v1231, %v1218
        %v1234 = vsel %vm459, %v1232, %v1220
        %vm1235 = vcmask 195584
        %v1236 = vsel %vm1235, %v1233, %v1226
        %v1237 = vsel %vm1235, %v1234, %v1228
        %v1238 = vpack.c.bf16 %v1237, %v1236
        %v1239 = vld [vmem:[%s3] sm:$0xf]
        %v1240 = vld [vmem:[%s3 + $0x4] sm:$0xf]
        %v1241 = vld [vmem:[%s3 + $0x8] sm:$0xf]
        %v1242 = vld [vmem:[%s3 + $0xc] sm:$0xf]
        %v1243 = vld [vmem:[%s4] sm:$0x1]
        %v1245 = vlaneseq
        %v1246 = vshrl.u32 %v1245, 7
        %v1247 = vsub.s32 0, %v1246
        %v1248 = vrot.slane %v1243, %v1247
        %v1254 = vunpack.c.l.b16 %v1239
        %v1255 = vunpack.c.l.b16 %v1240
        %v1256 = vunpack.c.l.b16 %v1241
        %v1257 = vunpack.c.l.b16 %v1242
        %v1258 = vpack.c.b16 %v1255, %v1254
        %v1259 = vpack.c.b16 %v1257, %v1256
        %v1263 = vsel %vm308, %v1238, 0
        %1265 = vmatprep.subr.bf16.mxu0 0
        %1266 = vmatpush1.bf16.msra.mxu0 %v1258
        %1267 = vmatprep.subr.bf16.mxu0 0
        %1268 = vmatpush1.bf16.msra.mxu0 %v1259
        %1269 = vmatprep.subr.bf16.mxu0 0
        %1270 = vmatpush1.bf16.msra.mxu0 0
        %1271 = vmatprep.subr.bf16.mxu0 0
        %1272 = vmatpush1.bf16.msra.mxu0 0
        %1273 = vmatprep.subr.bf16.mxu0 0
        %1274 = vmatpush1.bf16.msra.mxu0 0
        %1275 = vmatprep.subr.bf16.mxu0 0
        %1276 = vmatpush1.bf16.msra.mxu0 0
        %1277 = vmatprep.subr.bf16.mxu0 0
        %1278 = vmatpush1.bf16.msra.mxu0 0
        %1279 = vmatprep.subr.bf16.mxu0 0
        %1280 = vmatpush1.bf16.msra.mxu0 0
        %1281 = vmatprep.subr.bf16.mxu0 0
        %1282 = vmatpush1.bf16.msra.mxu0 0
        %1283 = vmatprep.subr.bf16.mxu0 0
        %1284 = vmatpush1.bf16.msra.mxu0 0
        %1285 = vmatprep.subr.bf16.mxu0 0
        %1286 = vmatpush1.bf16.msra.mxu0 0
        %1287 = vmatprep.subr.bf16.mxu0 0
        %1288 = vmatpush1.bf16.msra.mxu0 0
        %1289 = vmatprep.subr.bf16.mxu0 0
        %1290 = vmatpush1.bf16.msra.mxu0 0
        %1291 = vmatprep.subr.bf16.mxu0 0
        %1292 = vmatpush1.bf16.msra.mxu0 0
        %1293 = vmatprep.subr.bf16.mxu0 0
        %1294 = vmatpush1.bf16.msra.mxu0 0
        %1295 = vmatprep.subr.bf16.mxu0 0
        %1296 = vmatpush1.bf16.msra.mxu0 0
        %1297 = vmatprep.mubr.bf16.mxu0 0
        %1298 = vmatmul.mubr.bf16.gmra.mrb[0].mxu0 %v1263
        %v1299 = vpop.f32.mrb[0].mxu0
        %v1300 = vadd.f32 %v1248, %v1299
        %v1301 = vpop.f32.mrb[0].mxu0
        %v1302 = vpop.f32.mrb[0].mxu0
        %v1303 = vadd.f32 %v1248, %v1302
        %v1304 = vpop.f32.mrb[0].mxu0
        %1305 = vdwg.mxu0
        %v1306 = vadd.f32 %v1300, %v289
        %v1307 = vadd.f32 %v1303, %v290
        %v1308 = vsel %vm308, %v1306, 0.0
        %1309 = vadd.xlane.f32.xlu0 %v1308
        %v1310 = vpop.xlane.xlu0 %1309
        %v1311 = vsel %vm308, %v1307, 0.0
        %1312 = vadd.xlane.f32.xlu0 %v1311
        %v1313 = vpop.xlane.xlu0 %1312
        %v1314 = vrcp.pop 32.0
        %v1315 = vmul.f32 %v1310, %v1314
        %v1316 = vmul.f32 %v1313, %v1314
        %v1317 = vsub.f32 %v1306, %v1315
        %v1318 = vsub.f32 %v1307, %v1316
        %v1319 = vmul.f32 %v1317, %v1317
        %v1320 = vmul.f32 %v1318, %v1318
        %v1321 = vsel %vm308, %v1319, 0.0
        %1322 = vadd.xlane.f32.xlu0 %v1321
        %v1323 = vpop.xlane.xlu0 %1322
        %v1324 = vsel %vm308, %v1320, 0.0
        %1325 = vadd.xlane.f32.xlu0 %v1324
        %v1326 = vpop.xlane.xlu0 %1325
        %v1327 = vmul.f32 %v1323, %v1314
        %v1328 = vmul.f32 %v1326, %v1314
        %v1329 = vadd.f32 %v1327, 1e-06
        %v1330 = vadd.f32 %v1328, 1e-06
        %v1331 = vrsqrt.pop %v1329
        %v1332 = vrsqrt.pop %v1330
        %v1333 = vmul.f32 %v1317, %v1331
        %v1334 = vmul.f32 %v1318, %v1332
        %v1335 = vld [vmem:[%s5] sm:$0x1]
        %v1337 = vlaneseq
        %v1338 = vshrl.u32 %v1337, 7
        %v1339 = vsub.s32 0, %v1338
        %v1340 = vrot.slane %v1335, %v1339
        %v1342 = vmul.f32 %v1333, %v1340
        %v1343 = vmul.f32 %v1334, %v1340
        %v1344 = vld [vmem:[%s6] sm:$0x1]
        %v1346 = vlaneseq
        %v1347 = vshrl.u32 %v1346, 7
        %v1348 = vsub.s32 0, %v1347
        %v1349 = vrot.slane %v1344, %v1348
        %v1351 = vadd.f32 %v1342, %v1349
        %v1352 = vadd.f32 %v1343, %v1349
        %1353 = vst.msk [vmem:[%s271] sm:$0xff] %vm308, %v1351
        %1354 = vst.msk [vmem:[%s271 + $0x8] sm:$0xff] %vm308, %v1352
        %s1355 = sand.u32 %s181, 1
        %s1356 = scalar_lea.sflag [#allocation3], %s1355
        %s1357 = sand.u32 %s181, 1
        %s1358 = smul.addr %s1357, 16
        %s1359 = scalar_lea.vmem [#allocation2], %s1358
        // Predicated region
        $region49: #{prob_sparse_attention.1} parent=47 // pred_check
          %p1360 = pneg %p191
        $region50: #{prob_sparse_attention.1} parent=47 // pred_check_branch
          %1362 = sbr.rel (%p1360) target = $region52
        $region51: #{prob_sparse_attention.1} parent=47 // pred_region
          %s1364 = ssub.s32 256, 256
          %1365 = vsyncadd %s1356, %s1364
          %s1366 = smul.addr %s21, 2
          %s1367 = smul.addr %s1366, 128
          %s1368 = scalar_lea.hbm %s7, %s1367
          %s1369 = sshll.u32 %s1359, 4
          %s1370 = int_to_ptr.vmem [resolvable:$true] %s1369
          %1375 = dma.vmem_to_hbm [thread:$0]  %s1370, 256, %s1368, %s1356, 128, 128, 8
        $region52: #{prob_sparse_attention.1} parent=47 // pred_fallthru
          _
      $region48: #{prob_sparse_attention.1} parent=5 // pred_fallthru
        _
      %p1376 = scmp.le.s32.totalorder 2, %s16
      // Predicated region
      $region53: #{prob_sparse_attention.1} parent=5 // pred_check
        %p1377 = pneg %p1376
      $region54: #{prob_sparse_attention.1} parent=5 // pred_check_branch
        %1379 = sbr.rel (%p1377) target = $region56
      $region55: #{prob_sparse_attention.1} parent=5 // pred_region
        %s1380 = ssub.s32 %s16, 2
        // Predicated region
        $region57: #{prob_sparse_attention.1} parent=55 // pred_check
          %p1381 = pneg %p197
        $region58: #{prob_sparse_attention.1} parent=55 // pred_check_branch
          %1383 = sbr.rel (%p1381) target = $region60
        $region59: #{prob_sparse_attention.1} parent=55 // pred_region
          %s1384 = sand.u32 %s182, 1
          %s1385 = scalar_lea.sflag [#allocation3], %s1384
          %s1386 = sand.u32 %s182, 1
          %s1387 = smul.addr %s1386, 16
          %s1388 = scalar_lea.vmem [#allocation2], %s1387
          %1389 = dma.done %s1385, 256
        $region60: #{prob_sparse_attention.1} parent=55 // pred_fallthru
          _
      $region56: #{prob_sparse_attention.1} parent=5 // pred_fallthru
        _
    $region6: #{prob_sparse_attention.1} parent=1 // loop_footer
      %s20 = sadd.s32 1, %s16
    $region7: #{prob_sparse_attention.1} parent=1 // loop_footer_branch
      %15 = sbr.rel target = $region3
    $region8: #{prob_sparse_attention.1} parent=1 // loop_exit
      _
    %1390 = vsyncpa [#allocation3], 1
    %s1391 = scalar_lea.sflag [#allocation3], 1
    %1392 = vsyncpa %s1391, 1

</llo_original>
